<compile_context>
chip_gen: v7x
topology: tpu7x:2x2x1
jax: 0.10.0
libtpu: 0.0.40
codegen_flags: <defaults>
</compile_context>

<pallas_src>
import functools

import numpy as np

import jax
import jax.numpy as jnp
from jax.experimental import pallas as pl
from jax.experimental.pallas import tpu as pltpu


# ---------------------------------------------------------------------------
# Fused Pallas kernel: one grid step = one image, full CSPLayer.
# ---------------------------------------------------------------------------
def _csp_fused_kernel(x_ref, mask_ref,
                      w1_ref, b1_ref, w2_ref, b2_ref,
                      wm1_ref, bm1_ref, w9_ref, bm2_ref,
                      w3a_ref, w3b_ref, b3_ref,
                      o_ref, t1_ref, col_ref, *, H, W, hidden):
    M = H * W

    def mm(a, b):
        return jnp.dot(a, b, preferred_element_type=jnp.float32)

    def silu(v):
        return v * jax.nn.sigmoid(v)

    x = x_ref[0]                                            # (Cin, M)

    # conv1 / conv2 branches: 1x1 convs (BN scale pre-folded into weights).
    x1 = silu(mm(w1_ref[...], x) + b1_ref[...])             # (h, M)
    x2 = silu(mm(w2_ref[...], x) + b2_ref[...])             # (h, M)

    # Bottleneck 1x1.
    t1 = silu(mm(wm1_ref[...], x1) + bm1_ref[...])          # (h, M)
    t1_ref[...] = t1                                        # park for re-slicing

    # Bottleneck 3x3 (SAME padding) as a single K=9*hidden im2col matmul.
    # Tap (oy, ox) is a flat lane shift by oy*W+ox built via rectangular slice
    # copies into VMEM scratch; out-of-image positions are zeroed by the
    # zero-init + precomputed boundary mask.
    col_ref[...] = jnp.zeros_like(col_ref)
    taps = [(oy, ox) for oy in (-1, 0, 1) for ox in (-1, 0, 1)]
    for t, (oy, ox) in enumerate(taps):
        s = oy * W + ox
        r0 = t * hidden
        if s == 0:
            col_ref[r0:r0 + hidden, :] = t1
        elif s > 0:
            col_ref[r0:r0 + hidden, 0:M - s] = t1_ref[:, s:M]
        else:  # s < 0
            col_ref[r0:r0 + hidden, -s:M] = t1_ref[:, 0:M + s]
    col = col_ref[...] * mask_ref[...]                      # (9h, M)

    y = silu(mm(w9_ref[...], col) + bm2_ref[...])           # (h, M)
    x1m = y + x1                                            # shortcut add

    # conv3 over the (virtual) concat([x1m, x2]): split weights, no concat.
    out = silu(mm(w3a_ref[...], x1m) + mm(w3b_ref[...], x2) + b3_ref[...])
    o_ref[0] = out                                          # (Cout, M)


# ---------------------------------------------------------------------------
# Wrapper: parameter folding / layout plumbing + pallas_call.
# ---------------------------------------------------------------------------
def fold_bn(gamma, beta, mean, var, eps=1e-5):
    scale = gamma / jnp.sqrt(var + eps)
    bias = beta - mean * scale
    return scale, bias


def _fold_conv(p, eps):
    """Fold eval-mode BN into the conv weight (scale) and a per-channel bias."""
    s, b = fold_bn(p["gamma"], p["beta"], p["mean"], p["var"], eps)
    return p["w"] * s, b          # scale broadcasts over the Cout (last) dim


def _build_tap_mask(H, W, hidden):
    """(9*hidden, H*W) 0/1 mask zeroing 3x3 taps that fall outside the image."""
    m = np.arange(H * W)
    h_idx, w_idx = m // W, m % W
    rows = []
    for oy in (-1, 0, 1):
        for ox in (-1, 0, 1):
            valid = ((h_idx + oy >= 0) & (h_idx + oy < H) &
                     (w_idx + ox >= 0) & (w_idx + ox < W))
            rows.append(np.repeat(valid[None, :].astype(np.float32), hidden, 0))
    return jnp.asarray(np.concatenate(rows, axis=0))


def csp_layer_pallas(x_nchw, params, eps=1e-5):
    B, Cin, H, W = x_nchw.shape
    M = H * W
    xf = x_nchw.reshape(B, Cin, M).astype(jnp.float32)      # (C, M): lane-dense

    w1, c1 = _fold_conv(params["conv1"], eps)
    w2, c2 = _fold_conv(params["conv2"], eps)
    wm1, cm1 = _fold_conv(params["m0_conv1"], eps)
    wm2, cm2 = _fold_conv(params["m0_conv2"], eps)
    w3, c3 = _fold_conv(params["conv3"], eps)

    hidden = w1.shape[-1]
    Cout = w3.shape[-1]

    # Transposed (Cout, Cin) weights for the lane-dense (C, M) compute layout.
    w1_t = w1.reshape(Cin, hidden).T
    w2_t = w2.reshape(Cin, hidden).T
    wm1_t = wm1.reshape(hidden, hidden).T
    # (3,3,ci,co) -> (co, 9*ci): tap-major columns matching the kernel tap order.
    w9_t = jnp.transpose(wm2.reshape(9, hidden, hidden),
                         (2, 0, 1)).reshape(hidden, 9 * hidden)
    w3r = w3.reshape(2 * hidden, Cout)
    w3a_t = w3r[:hidden].T               # acts on x1m (first half of concat)
    w3b_t = w3r[hidden:].T               # acts on x2   (second half)

    col = lambda v: v.reshape(-1, 1)     # per-channel bias as a column
    mask = _build_tap_mask(H, W, hidden)

    kernel = functools.partial(_csp_fused_kernel, H=H, W=W, hidden=hidden)
    fixed = lambda b: (0, 0)
    out = pl.pallas_call(
        kernel,
        out_shape=jax.ShapeDtypeStruct((B, Cout, M), jnp.float32),
        grid=(B,),
        in_specs=[
            pl.BlockSpec((1, Cin, M), lambda b: (b, 0, 0)),
            pl.BlockSpec((9 * hidden, M), fixed),
            pl.BlockSpec((hidden, Cin), fixed),
            pl.BlockSpec((hidden, 1), fixed),
            pl.BlockSpec((hidden, Cin), fixed),
            pl.BlockSpec((hidden, 1), fixed),
            pl.BlockSpec((hidden, hidden), fixed),
            pl.BlockSpec((hidden, 1), fixed),
            pl.BlockSpec((hidden, 9 * hidden), fixed),
            pl.BlockSpec((hidden, 1), fixed),
            pl.BlockSpec((Cout, hidden), fixed),
            pl.BlockSpec((Cout, hidden), fixed),
            pl.BlockSpec((Cout, 1), fixed),
        ],
        out_specs=pl.BlockSpec((1, Cout, M), lambda b: (b, 0, 0)),
        scratch_shapes=[
            pltpu.VMEM((hidden, M), jnp.float32),         # t1 (bottleneck 1x1)
            pltpu.VMEM((9 * hidden, M), jnp.float32),     # im2col buffer
        ],
        compiler_params=pltpu.CompilerParams(
            dimension_semantics=("parallel",)),
    )(xf, mask,
      w1_t, col(c1), w2_t, col(c2),
      wm1_t, col(cm1), w9_t, col(cm2),
      w3a_t, w3b_t, col(c3))
    return out.reshape(B, Cout, H, W)                       # already NCHW order


# ---------------------------------------------------------------------------
# Deterministic parameter construction (Conv2d bias=False + BatchNorm2d).
# ---------------------------------------------------------------------------
def init_base_conv(key, cin, cout, ksize):
    k_w, k_g, k_b, k_m, k_v = jax.random.split(key, 5)
    fan_in = cin * ksize * ksize
    w = jax.random.normal(k_w, (ksize, ksize, cin, cout),
                          jnp.float32) / jnp.sqrt(fan_in)
    gamma = 1.0 + 0.1 * jax.random.normal(k_g, (cout,), jnp.float32)
    beta = 0.1 * jax.random.normal(k_b, (cout,), jnp.float32)
    mean = 0.1 * jax.random.normal(k_m, (cout,), jnp.float32)
    var = jnp.abs(jax.random.normal(k_v, (cout,), jnp.float32)) + 0.5
    return {"w": w, "gamma": gamma, "beta": beta, "mean": mean, "var": var}


# ---------------------------------------------------------------------------
# Pure-JAX reference (for correctness check)
# ---------------------------------------------------------------------------
def base_conv_ref(x_nhwc, p, eps=1e-5):
    y = jax.lax.conv_general_dilated(
        x_nhwc, p["w"], window_strides=(1, 1), padding="SAME",
        dimension_numbers=("NHWC", "HWIO", "NHWC"),
        precision=jax.lax.Precision.HIGHEST)
    s, b = fold_bn(p["gamma"], p["beta"], p["mean"], p["var"], eps)
    y = y * s + b
    return y * jax.nn.sigmoid(y)


def csp_layer_ref(x_nchw, params):
    x = jnp.transpose(x_nchw, (0, 2, 3, 1)).astype(jnp.float32)
    x1 = base_conv_ref(x, params["conv1"])
    x2 = base_conv_ref(x, params["conv2"])
    y = base_conv_ref(x1, params["m0_conv1"])
    y = base_conv_ref(y, params["m0_conv2"])
    x1 = y + x1                                 # shortcut (in == out channels)
    cat = jnp.concatenate([x1, x2], axis=-1)
    out = base_conv_ref(cat, params["conv3"])
    return jnp.transpose(out, (0, 3, 1, 2))


# ---------------------------------------------------------------------------
if __name__ == "__main__":
    # CSPLayer(in_channels=4, out_channels=8, n=1, shortcut=True,
    #          expansion=0.5, depthwise=False, act='silu')
    B, Cin, H, W = 2, 4, 16, 16
    Cout = 8
    hidden = int(Cout * 0.5)

    key = jax.random.PRNGKey(0)
    kx, k1, k2, k3, k4, k5 = jax.random.split(key, 6)
    x = jax.random.normal(kx, (B, Cin, H, W), jnp.float32)

    params = {
        "conv1":    init_base_conv(k1, Cin, hidden, 1),
        "conv2":    init_base_conv(k2, Cin, hidden, 1),
        "conv3":    init_base_conv(k3, 2 * hidden, Cout, 1),
        "m0_conv1": init_base_conv(k4, hidden, hidden, 1),
        "m0_conv2": init_base_conv(k5, hidden, hidden, 3),
    }

    out = jax.block_until_ready(jax.jit(csp_layer_pallas)(x, params))
    ref = jax.block_until_ready(csp_layer_ref(x, params))

    assert out.shape == (B, Cout, H, W), out.shape
    err = float(jnp.max(jnp.abs(out - ref)))
    assert jnp.allclose(out, ref, rtol=1e-4, atol=1e-4), err
    print("KERNEL_OK")
</pallas_src>

<mosaic_0001>
module attributes {stable_mosaic.version = 11 : i64} {
  func.func @_csp_fused_kernel(%arg0: i32, %arg1: memref<1x4x256xf32, #tpu.memory_space<vmem>>, %arg2: memref<36x256xf32, #tpu.memory_space<vmem>>, %arg3: memref<4x4xf32, #tpu.memory_space<vmem>>, %arg4: memref<4x1xf32, #tpu.memory_space<vmem>>, %arg5: memref<4x4xf32, #tpu.memory_space<vmem>>, %arg6: memref<4x1xf32, #tpu.memory_space<vmem>>, %arg7: memref<4x4xf32, #tpu.memory_space<vmem>>, %arg8: memref<4x1xf32, #tpu.memory_space<vmem>>, %arg9: memref<4x36xf32, #tpu.memory_space<vmem>>, %arg10: memref<4x1xf32, #tpu.memory_space<vmem>>, %arg11: memref<8x4xf32, #tpu.memory_space<vmem>>, %arg12: memref<8x4xf32, #tpu.memory_space<vmem>>, %arg13: memref<8x1xf32, #tpu.memory_space<vmem>>, %arg14: memref<1x8x256xf32, #tpu.memory_space<vmem>>, %arg15: memref<4x256xf32, #tpu.memory_space<vmem>>, %arg16: memref<36x256xf32, #tpu.memory_space<vmem>>) attributes {dimension_semantics = [#tpu.dimension_semantics<parallel>], iteration_bounds = array<i64: 2>, scalar_prefetch = 0 : i64, scratch_operands = 2 : i64, tpu.core_type = #tpu.core_type<tc>, window_params = [{transform_indices = @transform_0, window_bounds = array<i64: 1, 4, 256>}, {pipeline_mode = #tpu.pipeline_mode<synchronous>, transform_indices = @transform_1, window_bounds = array<i64: 36, 256>}, {pipeline_mode = #tpu.pipeline_mode<synchronous>, transform_indices = @transform_2, window_bounds = array<i64: 4, 4>}, {pipeline_mode = #tpu.pipeline_mode<synchronous>, transform_indices = @transform_3, window_bounds = array<i64: 4, 1>}, {pipeline_mode = #tpu.pipeline_mode<synchronous>, transform_indices = @transform_4, window_bounds = array<i64: 4, 4>}, {pipeline_mode = #tpu.pipeline_mode<synchronous>, transform_indices = @transform_5, window_bounds = array<i64: 4, 1>}, {pipeline_mode = #tpu.pipeline_mode<synchronous>, transform_indices = @transform_6, window_bounds = array<i64: 4, 4>}, {pipeline_mode = #tpu.pipeline_mode<synchronous>, transform_indices = @transform_7, window_bounds = array<i64: 4, 1>}, {pipeline_mode = #tpu.pipeline_mode<synchronous>, transform_indices = @transform_8, window_bounds = array<i64: 4, 36>}, {pipeline_mode = #tpu.pipeline_mode<synchronous>, transform_indices = @transform_9, window_bounds = array<i64: 4, 1>}, {pipeline_mode = #tpu.pipeline_mode<synchronous>, transform_indices = @transform_10, window_bounds = array<i64: 8, 4>}, {pipeline_mode = #tpu.pipeline_mode<synchronous>, transform_indices = @transform_11, window_bounds = array<i64: 8, 4>}, {pipeline_mode = #tpu.pipeline_mode<synchronous>, transform_indices = @transform_12, window_bounds = array<i64: 8, 1>}, {transform_indices = @transform_13, window_bounds = array<i64: 1, 8, 256>}]} {
    %c0 = arith.constant 0 : index
    %c0_0 = arith.constant 0 : index
    %c0_1 = arith.constant 0 : index
    %0 = vector.load %arg1[%c0, %c0_0, %c0_1] : memref<1x4x256xf32, #tpu.memory_space<vmem>>, vector<1x4x256xf32>
    %1 = vector.shape_cast %0 : vector<1x4x256xf32> to vector<4x256xf32>
    %c0_2 = arith.constant 0 : index
    %c0_3 = arith.constant 0 : index
    %2 = vector.load %arg3[%c0_2, %c0_3] : memref<4x4xf32, #tpu.memory_space<vmem>>, vector<4x4xf32>
    %cst = arith.constant dense<0.000000e+00> : vector<4x256xf32>
    %3 = tpu.matmul %2, %1, %cst {dimension_numbers = #tpu.dot_dimension_numbers<[1], [0], [0], [1], [0, 0, 1, 1], [], []>} : vector<4x4xf32>, vector<4x256xf32>, vector<4x256xf32> -> vector<4x256xf32>
    %c0_4 = arith.constant 0 : index
    %c0_5 = arith.constant 0 : index
    %4 = vector.load %arg4[%c0_4, %c0_5] : memref<4x1xf32, #tpu.memory_space<vmem>>, vector<4x1xf32>
    %5 = vector.broadcast %4 : vector<4x1xf32> to vector<4x256xf32>
    %6 = arith.addf %3, %5 : vector<4x256xf32>
    %7 = arith.negf %6 : vector<4x256xf32>
    %8 = math.exp %7 : vector<4x256xf32>
    %cst_6 = arith.constant 1.000000e+00 : f32
    %9 = vector.broadcast %cst_6 : f32 to vector<4x256xf32>
    %10 = arith.addf %9, %8 : vector<4x256xf32>
    %11 = arith.divf %9, %10 : vector<4x256xf32>
    %12 = arith.mulf %6, %11 : vector<4x256xf32>
    %c0_7 = arith.constant 0 : index
    %c0_8 = arith.constant 0 : index
    %13 = vector.load %arg5[%c0_7, %c0_8] : memref<4x4xf32, #tpu.memory_space<vmem>>, vector<4x4xf32>
    %cst_9 = arith.constant dense<0.000000e+00> : vector<4x256xf32>
    %14 = tpu.matmul %13, %1, %cst_9 {dimension_numbers = #tpu.dot_dimension_numbers<[1], [0], [0], [1], [0, 0, 1, 1], [], []>} : vector<4x4xf32>, vector<4x256xf32>, vector<4x256xf32> -> vector<4x256xf32>
    %c0_10 = arith.constant 0 : index
    %c0_11 = arith.constant 0 : index
    %15 = vector.load %arg6[%c0_10, %c0_11] : memref<4x1xf32, #tpu.memory_space<vmem>>, vector<4x1xf32>
    %16 = vector.broadcast %15 : vector<4x1xf32> to vector<4x256xf32>
    %17 = arith.addf %14, %16 : vector<4x256xf32>
    %18 = arith.negf %17 : vector<4x256xf32>
    %19 = math.exp %18 : vector<4x256xf32>
    %cst_12 = arith.constant 1.000000e+00 : f32
    %20 = vector.broadcast %cst_12 : f32 to vector<4x256xf32>
    %21 = arith.addf %20, %19 : vector<4x256xf32>
    %22 = arith.divf %20, %21 : vector<4x256xf32>
    %23 = arith.mulf %17, %22 : vector<4x256xf32>
    %c0_13 = arith.constant 0 : index
    %c0_14 = arith.constant 0 : index
    %24 = vector.load %arg7[%c0_13, %c0_14] : memref<4x4xf32, #tpu.memory_space<vmem>>, vector<4x4xf32>
    %cst_15 = arith.constant dense<0.000000e+00> : vector<4x256xf32>
    %25 = tpu.matmul %24, %12, %cst_15 {dimension_numbers = #tpu.dot_dimension_numbers<[1], [0], [0], [1], [0, 0, 1, 1], [], []>} : vector<4x4xf32>, vector<4x256xf32>, vector<4x256xf32> -> vector<4x256xf32>
    %c0_16 = arith.constant 0 : index
    %c0_17 = arith.constant 0 : index
    %26 = vector.load %arg8[%c0_16, %c0_17] : memref<4x1xf32, #tpu.memory_space<vmem>>, vector<4x1xf32>
    %27 = vector.broadcast %26 : vector<4x1xf32> to vector<4x256xf32>
    %28 = arith.addf %25, %27 : vector<4x256xf32>
    %29 = arith.negf %28 : vector<4x256xf32>
    %30 = math.exp %29 : vector<4x256xf32>
    %cst_18 = arith.constant 1.000000e+00 : f32
    %31 = vector.broadcast %cst_18 : f32 to vector<4x256xf32>
    %32 = arith.addf %31, %30 : vector<4x256xf32>
    %33 = arith.divf %31, %32 : vector<4x256xf32>
    %34 = arith.mulf %28, %33 : vector<4x256xf32>
    %c0_19 = arith.constant 0 : index
    %c0_20 = arith.constant 0 : index
    %35 = vector.load %arg15[%c0_19, %c0_20] : memref<4x256xf32, #tpu.memory_space<vmem>>, vector<4x256xf32>
    tpu.vector_store %arg15[%c0_19, %c0_20], %34 {strides = array<i32>} : memref<4x256xf32, #tpu.memory_space<vmem>>, vector<4x256xf32>,
    %cst_21 = arith.constant 0.000000e+00 : f32
    %36 = vector.broadcast %cst_21 : f32 to vector<36x256xf32>
    %c0_22 = arith.constant 0 : index
    %c0_23 = arith.constant 0 : index
    %37 = vector.load %arg16[%c0_22, %c0_23] : memref<36x256xf32, #tpu.memory_space<vmem>>, vector<36x256xf32>
    tpu.vector_store %arg16[%c0_22, %c0_23], %36 {strides = array<i32>} : memref<36x256xf32, #tpu.memory_space<vmem>>, vector<36x256xf32>,
    %c0_24 = arith.constant 0 : index
    %c0_25 = arith.constant 0 : index
    %38 = vector.load %arg15[%c0_24, %c0_25] : memref<4x256xf32, #tpu.memory_space<vmem>>, vector<4x239xf32>
    %c0_26 = arith.constant 0 : index
    %c17 = arith.constant 17 : index
    %39 = vector.load %arg16[%c0_26, %c17] : memref<36x256xf32, #tpu.memory_space<vmem>>, vector<4x239xf32>
    tpu.vector_store %arg16[%c0_26, %c17], %38 {strides = array<i32>} : memref<36x256xf32, #tpu.memory_space<vmem>>, vector<4x239xf32>,
    %c0_27 = arith.constant 0 : index
    %c0_28 = arith.constant 0 : index
    %40 = vector.load %arg15[%c0_27, %c0_28] : memref<4x256xf32, #tpu.memory_space<vmem>>, vector<4x240xf32>
    %c4 = arith.constant 4 : index
    %c16 = arith.constant 16 : index
    %41 = vector.load %arg16[%c4, %c16] : memref<36x256xf32, #tpu.memory_space<vmem>>, vector<4x240xf32>
    tpu.vector_store %arg16[%c4, %c16], %40 {strides = array<i32>} : memref<36x256xf32, #tpu.memory_space<vmem>>, vector<4x240xf32>,
    %c0_29 = arith.constant 0 : index
    %c0_30 = arith.constant 0 : index
    %42 = vector.load %arg15[%c0_29, %c0_30] : memref<4x256xf32, #tpu.memory_space<vmem>>, vector<4x241xf32>
    %c8 = arith.constant 8 : index
    %c15 = arith.constant 15 : index
    %43 = vector.load %arg16[%c8, %c15] : memref<36x256xf32, #tpu.memory_space<vmem>>, vector<4x241xf32>
    tpu.vector_store %arg16[%c8, %c15], %42 {strides = array<i32>} : memref<36x256xf32, #tpu.memory_space<vmem>>, vector<4x241xf32>,
    %c0_31 = arith.constant 0 : index
    %c0_32 = arith.constant 0 : index
    %44 = vector.load %arg15[%c0_31, %c0_32] : memref<4x256xf32, #tpu.memory_space<vmem>>, vector<4x255xf32>
    %c12 = arith.constant 12 : index
    %c1 = arith.constant 1 : index
    %45 = vector.load %arg16[%c12, %c1] : memref<36x256xf32, #tpu.memory_space<vmem>>, vector<4x255xf32>
    tpu.vector_store %arg16[%c12, %c1], %44 {strides = array<i32>} : memref<36x256xf32, #tpu.memory_space<vmem>>, vector<4x255xf32>,
    %c16_33 = arith.constant 16 : index
    %c0_34 = arith.constant 0 : index
    %46 = vector.load %arg16[%c16_33, %c0_34] : memref<36x256xf32, #tpu.memory_space<vmem>>, vector<4x256xf32>
    tpu.vector_store %arg16[%c16_33, %c0_34], %34 {strides = array<i32>} : memref<36x256xf32, #tpu.memory_space<vmem>>, vector<4x256xf32>,
    %c0_35 = arith.constant 0 : index
    %c1_36 = arith.constant 1 : index
    %47 = vector.load %arg15[%c0_35, %c1_36] : memref<4x256xf32, #tpu.memory_space<vmem>>, vector<4x255xf32>
    %c20 = arith.constant 20 : index
    %c0_37 = arith.constant 0 : index
    %48 = vector.load %arg16[%c20, %c0_37] : memref<36x256xf32, #tpu.memory_space<vmem>>, vector<4x255xf32>
    tpu.vector_store %arg16[%c20, %c0_37], %47 {strides = array<i32>} : memref<36x256xf32, #tpu.memory_space<vmem>>, vector<4x255xf32>,
    %c0_38 = arith.constant 0 : index
    %c15_39 = arith.constant 15 : index
    %49 = vector.load %arg15[%c0_38, %c15_39] : memref<4x256xf32, #tpu.memory_space<vmem>>, vector<4x241xf32>
    %c24 = arith.constant 24 : index
    %c0_40 = arith.constant 0 : index
    %50 = vector.load %arg16[%c24, %c0_40] : memref<36x256xf32, #tpu.memory_space<vmem>>, vector<4x241xf32>
    tpu.vector_store %arg16[%c24, %c0_40], %49 {strides = array<i32>} : memref<36x256xf32, #tpu.memory_space<vmem>>, vector<4x241xf32>,
    %c0_41 = arith.constant 0 : index
    %c16_42 = arith.constant 16 : index
    %51 = vector.load %arg15[%c0_41, %c16_42] : memref<4x256xf32, #tpu.memory_space<vmem>>, vector<4x240xf32>
    %c28 = arith.constant 28 : index
    %c0_43 = arith.constant 0 : index
    %52 = vector.load %arg16[%c28, %c0_43] : memref<36x256xf32, #tpu.memory_space<vmem>>, vector<4x240xf32>
    tpu.vector_store %arg16[%c28, %c0_43], %51 {strides = array<i32>} : memref<36x256xf32, #tpu.memory_space<vmem>>, vector<4x240xf32>,
    %c0_44 = arith.constant 0 : index
    %c17_45 = arith.constant 17 : index
    %53 = vector.load %arg15[%c0_44, %c17_45] : memref<4x256xf32, #tpu.memory_space<vmem>>, vector<4x239xf32>
    %c32 = arith.constant 32 : index
    %c0_46 = arith.constant 0 : index
    %54 = vector.load %arg16[%c32, %c0_46] : memref<36x256xf32, #tpu.memory_space<vmem>>, vector<4x239xf32>
    tpu.vector_store %arg16[%c32, %c0_46], %53 {strides = array<i32>} : memref<36x256xf32, #tpu.memory_space<vmem>>, vector<4x239xf32>,
    %c0_47 = arith.constant 0 : index
    %c0_48 = arith.constant 0 : index
    %55 = vector.load %arg16[%c0_47, %c0_48] : memref<36x256xf32, #tpu.memory_space<vmem>>, vector<36x256xf32>
    %c0_49 = arith.constant 0 : index
    %c0_50 = arith.constant 0 : index
    %56 = vector.load %arg2[%c0_49, %c0_50] : memref<36x256xf32, #tpu.memory_space<vmem>>, vector<36x256xf32>
    %57 = arith.mulf %55, %56 : vector<36x256xf32>
    %c0_51 = arith.constant 0 : index
    %c0_52 = arith.constant 0 : index
    %58 = vector.load %arg9[%c0_51, %c0_52] : memref<4x36xf32, #tpu.memory_space<vmem>>, vector<4x36xf32>
    %cst_53 = arith.constant dense<0.000000e+00> : vector<4x256xf32>
    %59 = tpu.matmul %58, %57, %cst_53 {dimension_numbers = #tpu.dot_dimension_numbers<[1], [0], [0], [1], [0, 0, 1, 1], [], []>} : vector<4x36xf32>, vector<36x256xf32>, vector<4x256xf32> -> vector<4x256xf32>
    %c0_54 = arith.constant 0 : index
    %c0_55 = arith.constant 0 : index
    %60 = vector.load %arg10[%c0_54, %c0_55] : memref<4x1xf32, #tpu.memory_space<vmem>>, vector<4x1xf32>
    %61 = vector.broadcast %60 : vector<4x1xf32> to vector<4x256xf32>
    %62 = arith.addf %59, %61 : vector<4x256xf32>
    %63 = arith.negf %62 : vector<4x256xf32>
    %64 = math.exp %63 : vector<4x256xf32>
    %cst_56 = arith.constant 1.000000e+00 : f32
    %65 = vector.broadcast %cst_56 : f32 to vector<4x256xf32>
    %66 = arith.addf %65, %64 : vector<4x256xf32>
    %67 = arith.divf %65, %66 : vector<4x256xf32>
    %68 = arith.mulf %62, %67 : vector<4x256xf32>
    %69 = arith.addf %68, %12 : vector<4x256xf32>
    %c0_57 = arith.constant 0 : index
    %c0_58 = arith.constant 0 : index
    %70 = vector.load %arg11[%c0_57, %c0_58] : memref<8x4xf32, #tpu.memory_space<vmem>>, vector<8x4xf32>
    %cst_59 = arith.constant dense<0.000000e+00> : vector<8x256xf32>
    %71 = tpu.matmul %70, %69, %cst_59 {dimension_numbers = #tpu.dot_dimension_numbers<[1], [0], [0], [1], [0, 0, 1, 1], [], []>} : vector<8x4xf32>, vector<4x256xf32>, vector<8x256xf32> -> vector<8x256xf32>
    %c0_60 = arith.constant 0 : index
    %c0_61 = arith.constant 0 : index
    %72 = vector.load %arg12[%c0_60, %c0_61] : memref<8x4xf32, #tpu.memory_space<vmem>>, vector<8x4xf32>
    %cst_62 = arith.constant dense<0.000000e+00> : vector<8x256xf32>
    %73 = tpu.matmul %72, %23, %cst_62 {dimension_numbers = #tpu.dot_dimension_numbers<[1], [0], [0], [1], [0, 0, 1, 1], [], []>} : vector<8x4xf32>, vector<4x256xf32>, vector<8x256xf32> -> vector<8x256xf32>
    %74 = arith.addf %71, %73 : vector<8x256xf32>
    %c0_63 = arith.constant 0 : index
    %c0_64 = arith.constant 0 : index
    %75 = vector.load %arg13[%c0_63, %c0_64] : memref<8x1xf32, #tpu.memory_space<vmem>>, vector<8x1xf32>
    %76 = vector.broadcast %75 : vector<8x1xf32> to vector<8x256xf32>
    %77 = arith.addf %74, %76 : vector<8x256xf32>
    %78 = arith.negf %77 : vector<8x256xf32>
    %79 = math.exp %78 : vector<8x256xf32>
    %cst_65 = arith.constant 1.000000e+00 : f32
    %80 = vector.broadcast %cst_65 : f32 to vector<8x256xf32>
    %81 = arith.addf %80, %79 : vector<8x256xf32>
    %82 = arith.divf %80, %81 : vector<8x256xf32>
    %83 = arith.mulf %77, %82 : vector<8x256xf32>
    %c0_66 = arith.constant 0 : index
    %c0_67 = arith.constant 0 : index
    %c0_68 = arith.constant 0 : index
    %84 = vector.load %arg14[%c0_66, %c0_67, %c0_68] : memref<1x8x256xf32, #tpu.memory_space<vmem>>, vector<1x8x256xf32>
    %85 = vector.shape_cast %84 : vector<1x8x256xf32> to vector<8x256xf32>
    %86 = vector.shape_cast %83 : vector<8x256xf32> to vector<1x8x256xf32>
    tpu.vector_store %arg14[%c0_66, %c0_67, %c0_68], %86 {strides = array<i32>} : memref<1x8x256xf32, #tpu.memory_space<vmem>>, vector<1x8x256xf32>,
    return
  }
  func.func @transform_0(%arg0: i32) -> (i32, i32, i32) {
    %c0_i32 = arith.constant 0 : i32
    %c0_i32_0 = arith.constant 0 : i32
    %c0_i32_1 = arith.constant 0 : i32
    return %arg0, %c0_i32, %c0_i32_0 : i32, i32, i32
  }
  func.func @transform_1(%arg0: i32) -> (i32, i32) {
    %c0_i32 = arith.constant 0 : i32
    %c0_i32_0 = arith.constant 0 : i32
    %c0_i32_1 = arith.constant 0 : i32
    return %c0_i32, %c0_i32_0 : i32, i32
  }
  func.func @transform_2(%arg0: i32) -> (i32, i32) {
    %c0_i32 = arith.constant 0 : i32
    %c0_i32_0 = arith.constant 0 : i32
    %c0_i32_1 = arith.constant 0 : i32
    return %c0_i32, %c0_i32_0 : i32, i32
  }
  func.func @transform_3(%arg0: i32) -> (i32, i32) {
    %c0_i32 = arith.constant 0 : i32
    %c0_i32_0 = arith.constant 0 : i32
    %c0_i32_1 = arith.constant 0 : i32
    return %c0_i32, %c0_i32_0 : i32, i32
  }
  func.func @transform_4(%arg0: i32) -> (i32, i32) {
    %c0_i32 = arith.constant 0 : i32
    %c0_i32_0 = arith.constant 0 : i32
    %c0_i32_1 = arith.constant 0 : i32
    return %c0_i32, %c0_i32_0 : i32, i32
  }
  func.func @transform_5(%arg0: i32) -> (i32, i32) {
    %c0_i32 = arith.constant 0 : i32
    %c0_i32_0 = arith.constant 0 : i32
    %c0_i32_1 = arith.constant 0 : i32
    return %c0_i32, %c0_i32_0 : i32, i32
  }
  func.func @transform_6(%arg0: i32) -> (i32, i32) {
    %c0_i32 = arith.constant 0 : i32
    %c0_i32_0 = arith.constant 0 : i32
    %c0_i32_1 = arith.constant 0 : i32
    return %c0_i32, %c0_i32_0 : i32, i32
  }
  func.func @transform_7(%arg0: i32) -> (i32, i32) {
    %c0_i32 = arith.constant 0 : i32
    %c0_i32_0 = arith.constant 0 : i32
    %c0_i32_1 = arith.constant 0 : i32
    return %c0_i32, %c0_i32_0 : i32, i32
  }
  func.func @transform_8(%arg0: i32) -> (i32, i32) {
    %c0_i32 = arith.constant 0 : i32
    %c0_i32_0 = arith.constant 0 : i32
    %c0_i32_1 = arith.constant 0 : i32
    return %c0_i32, %c0_i32_0 : i32, i32
  }
  func.func @transform_9(%arg0: i32) -> (i32, i32) {
    %c0_i32 = arith.constant 0 : i32
    %c0_i32_0 = arith.constant 0 : i32
    %c0_i32_1 = arith.constant 0 : i32
    return %c0_i32, %c0_i32_0 : i32, i32
  }
  func.func @transform_10(%arg0: i32) -> (i32, i32) {
    %c0_i32 = arith.constant 0 : i32
    %c0_i32_0 = arith.constant 0 : i32
    %c0_i32_1 = arith.constant 0 : i32
    return %c0_i32, %c0_i32_0 : i32, i32
  }
  func.func @transform_11(%arg0: i32) -> (i32, i32) {
    %c0_i32 = arith.constant 0 : i32
    %c0_i32_0 = arith.constant 0 : i32
    %c0_i32_1 = arith.constant 0 : i32
    return %c0_i32, %c0_i32_0 : i32, i32
  }
  func.func @transform_12(%arg0: i32) -> (i32, i32) {
    %c0_i32 = arith.constant 0 : i32
    %c0_i32_0 = arith.constant 0 : i32
    %c0_i32_1 = arith.constant 0 : i32
    return %c0_i32, %c0_i32_0 : i32, i32
  }
  func.func @transform_13(%arg0: i32) -> (i32, i32, i32) {
    %c0_i32 = arith.constant 0 : i32
    %c0_i32_0 = arith.constant 0 : i32
    %c0_i32_1 = arith.constant 0 : i32
    return %arg0, %c0_i32, %c0_i32_0 : i32, i32, i32
  }
}

</mosaic_0001>

<llo_original>
// kernel: csp_layer_pallas.1
$region0: #{csp_layer_pallas.1}
  #allocation0 [shape = 'u32[]', space=smem, size = 0x4, offset = 0x4, fixed_abs, tag = 'smem constant byte address 0x4 - core index']
  #allocation1 [shape = 'u32[144,128]{1,0:T(1,128)}', space=vmem, size = 0x12000, scoped, tag = 'internal scratch']
  #allocation2 [shape = 'f32[4,256]{1,0:T(4,128)}', space=vmem, size = 0x1000, scoped, tag = 'scratch operand']
  #allocation3 [shape = 'f32[36,256]{1,0:T(8,128)}', space=vmem, size = 0xa000, scoped, tag = 'scratch operand']
  %s0 = inlined_call_operand.vmem [shape: f32[2,4,256], index: 0, kind: input, shape index: {}]
  %s1 = inlined_call_operand.vmem [shape: f32[36,256], index: 1, kind: input, shape index: {}]
  %s2 = inlined_call_operand.vmem [shape: f32[4,4], index: 2, kind: input, shape index: {}]
  %s3 = inlined_call_operand.vmem [shape: f32[4,1], index: 3, kind: input, shape index: {}]
  %s4 = inlined_call_operand.vmem [shape: f32[4,4], index: 4, kind: input, shape index: {}]
  %s5 = inlined_call_operand.vmem [shape: f32[4,1], index: 5, kind: input, shape index: {}]
  %s6 = inlined_call_operand.vmem [shape: f32[4,4], index: 6, kind: input, shape index: {}]
  %s7 = inlined_call_operand.vmem [shape: f32[4,1], index: 7, kind: input, shape index: {}]
  %s8 = inlined_call_operand.vmem [shape: f32[4,36], index: 8, kind: input, shape index: {}]
  %s9 = inlined_call_operand.vmem [shape: f32[4,1], index: 9, kind: input, shape index: {}]
  %s10 = inlined_call_operand.vmem [shape: f32[8,4], index: 10, kind: input, shape index: {}]
  %s11 = inlined_call_operand.vmem [shape: f32[8,4], index: 11, kind: input, shape index: {}]
  %s12 = inlined_call_operand.vmem [shape: f32[8,1], index: 12, kind: input, shape index: {}]
  %s13 = inlined_call_operand.vmem [shape: f32[2,8,256], index: 13, kind: output, shape index: {}]
  %s14 = sld [smem:[#allocation0]]
  $region85: #{csp_layer_pallas.1} parent=0
    _
  %s16 = ssub.s32 1, %s14
  %s17 = scalar_select 0, %s16, %s14
  loop: start=0, step=1, limit=4
  $region2: #{csp_layer_pallas.1} parent=0 // loop_pre_header
    _
  $region3: #{csp_layer_pallas.1} parent=0 // loop_header
    %s19 = sphi 0, %s23
    %p20 = scmp.ge.s32.totalorder %s19, 4
    %s29 = sphi 0, %s31
    %s32 = sphi 0, %s29
    %s33 = sphi 0, %s32
    %s49 = sphi 0, %s33
    %s53 = sphi 0, %s53
    %s55 = sphi 0, %s53
    %s56 = sphi 0, %s55
    %s70 = sphi 0, %s56
    %s74 = sphi 0, %s74
    %s76 = sphi 0, %s74
    %s77 = sphi 0, %s76
    %s91 = sphi 0, %s77
    %s95 = sphi 0, %s95
    %s97 = sphi 0, %s95
    %s98 = sphi 0, %s97
    %s112 = sphi 0, %s98
    %s116 = sphi 0, %s116
    %s118 = sphi 0, %s116
    %s119 = sphi 0, %s118
    %s133 = sphi 0, %s119
    %s137 = sphi 0, %s137
    %s139 = sphi 0, %s137
    %s140 = sphi 0, %s139
    %s154 = sphi 0, %s140
    %s158 = sphi 0, %s158
    %s160 = sphi 0, %s158
    %s161 = sphi 0, %s160
    %s175 = sphi 0, %s161
    %s179 = sphi 0, %s179
    %s181 = sphi 0, %s179
    %s182 = sphi 0, %s181
    %s196 = sphi 0, %s182
    %s200 = sphi 0, %s200
    %s202 = sphi 0, %s200
    %s203 = sphi 0, %s202
    %s217 = sphi 0, %s203
    %s221 = sphi 0, %s221
    %s223 = sphi 0, %s221
    %s224 = sphi 0, %s223
    %s238 = sphi 0, %s224
    %s242 = sphi 0, %s242
    %s244 = sphi 0, %s242
    %s245 = sphi 0, %s244
    %s259 = sphi 0, %s245
    %s263 = sphi 0, %s263
    %s265 = sphi 0, %s263
    %s266 = sphi 0, %s265
    %s280 = sphi 0, %s266
    %s284 = sphi 0, %s284
    %s286 = sphi 0, %s284
    %s287 = sphi 0, %s286
    %s301 = sphi 0, %s287
    %s307 = sphi 0, %s309
    %s310 = sphi 0, %s307
    %s311 = sphi 0, %s310
    %s327 = sphi 0, %s311
  $region4: #{csp_layer_pallas.1} parent=0 // loop_header_branch
    %22 = sbr.rel (%p20) target = $region8
  $region5: #{csp_layer_pallas.1} parent=0 // loop_body
    %s24 = ssub.s32 %s19, 1
    %s25 = ssub.s32 %s19, 2
    %s26 = sadd.s32 %s19, 1
    %s27 = ssub.s32 %s19, %s26
    %p28 = scmp.eq.s32.totalorder %s27, 0
    %s30 = sadd.s32 %s29, 1
    %s31 = scalar_select %p28, %s29, %s30
    %p34 = pneg %p28
    %p35 = scmp.eq.s32.totalorder %s19, 1
    %p36 = por %p34, %p35
    %p37 = scmp.ne.s32.totalorder %s29, %s32
    %p38 = scmp.eq.s32.totalorder %s19, 0
    %p39 = por %p37, %p38
    %p40 = scmp.ne.s32.totalorder %s29, %s32
    %p41 = scmp.eq.s32.totalorder %s24, 1
    %p42 = por %p40, %p41
    %p43 = scmp.ne.s32.totalorder %s32, %s33
    %p44 = scmp.eq.s32.totalorder %s24, 0
    %p45 = por %p43, %p44
    %p46 = scmp.ne.s32.totalorder %s32, %s33
    %p47 = scmp.eq.s32.totalorder %s25, 1
    %p48 = por %p46, %p47
    %p50 = scmp.ne.s32.totalorder %s33, %s49
    %p51 = scmp.eq.s32.totalorder %s25, 0
    %p52 = por %p50, %p51
    %s54 = sadd.s32 %s53, 1
    %p57 = scmp.eq.s32.totalorder %s19, 1
    %p58 = scmp.ne.s32.totalorder %s53, %s55
    %p59 = scmp.eq.s32.totalorder %s19, 0
    %p60 = por %p58, %p59
    %p61 = scmp.ne.s32.totalorder %s53, %s55
    %p62 = scmp.eq.s32.totalorder %s24, 1
    %p63 = por %p61, %p62
    %p64 = scmp.ne.s32.totalorder %s55, %s56
    %p65 = scmp.eq.s32.totalorder %s24, 0
    %p66 = por %p64, %p65
    %p67 = scmp.ne.s32.totalorder %s55, %s56
    %p68 = scmp.eq.s32.totalorder %s25, 1
    %p69 = por %p67, %p68
    %p71 = scmp.ne.s32.totalorder %s56, %s70
    %p72 = scmp.eq.s32.totalorder %s25, 0
    %p73 = por %p71, %p72
    %s75 = sadd.s32 %s74, 1
    %p78 = scmp.eq.s32.totalorder %s19, 1
    %p79 = scmp.ne.s32.totalorder %s74, %s76
    %p80 = scmp.eq.s32.totalorder %s19, 0
    %p81 = por %p79, %p80
    %p82 = scmp.ne.s32.totalorder %s74, %s76
    %p83 = scmp.eq.s32.totalorder %s24, 1
    %p84 = por %p82, %p83
    %p85 = scmp.ne.s32.totalorder %s76, %s77
    %p86 = scmp.eq.s32.totalorder %s24, 0
    %p87 = por %p85, %p86
    %p88 = scmp.ne.s32.totalorder %s76, %s77
    %p89 = scmp.eq.s32.totalorder %s25, 1
    %p90 = por %p88, %p89
    %p92 = scmp.ne.s32.totalorder %s77, %s91
    %p93 = scmp.eq.s32.totalorder %s25, 0
    %p94 = por %p92, %p93
    %s96 = sadd.s32 %s95, 1
    %p99 = scmp.eq.s32.totalorder %s19, 1
    %p100 = scmp.ne.s32.totalorder %s95, %s97
    %p101 = scmp.eq.s32.totalorder %s19, 0
    %p102 = por %p100, %p101
    %p103 = scmp.ne.s32.totalorder %s95, %s97
    %p104 = scmp.eq.s32.totalorder %s24, 1
    %p105 = por %p103, %p104
    %p106 = scmp.ne.s32.totalorder %s97, %s98
    %p107 = scmp.eq.s32.totalorder %s24, 0
    %p108 = por %p106, %p107
    %p109 = scmp.ne.s32.totalorder %s97, %s98
    %p110 = scmp.eq.s32.totalorder %s25, 1
    %p111 = por %p109, %p110
    %p113 = scmp.ne.s32.totalorder %s98, %s112
    %p114 = scmp.eq.s32.totalorder %s25, 0
    %p115 = por %p113, %p114
    %s117 = sadd.s32 %s116, 1
    %p120 = scmp.eq.s32.totalorder %s19, 1
    %p121 = scmp.ne.s32.totalorder %s116, %s118
    %p122 = scmp.eq.s32.totalorder %s19, 0
    %p123 = por %p121, %p122
    %p124 = scmp.ne.s32.totalorder %s116, %s118
    %p125 = scmp.eq.s32.totalorder %s24, 1
    %p126 = por %p124, %p125
    %p127 = scmp.ne.s32.totalorder %s118, %s119
    %p128 = scmp.eq.s32.totalorder %s24, 0
    %p129 = por %p127, %p128
    %p130 = scmp.ne.s32.totalorder %s118, %s119
    %p131 = scmp.eq.s32.totalorder %s25, 1
    %p132 = por %p130, %p131
    %p134 = scmp.ne.s32.totalorder %s119, %s133
    %p135 = scmp.eq.s32.totalorder %s25, 0
    %p136 = por %p134, %p135
    %s138 = sadd.s32 %s137, 1
    %p141 = scmp.eq.s32.totalorder %s19, 1
    %p142 = scmp.ne.s32.totalorder %s137, %s139
    %p143 = scmp.eq.s32.totalorder %s19, 0
    %p144 = por %p142, %p143
    %p145 = scmp.ne.s32.totalorder %s137, %s139
    %p146 = scmp.eq.s32.totalorder %s24, 1
    %p147 = por %p145, %p146
    %p148 = scmp.ne.s32.totalorder %s139, %s140
    %p149 = scmp.eq.s32.totalorder %s24, 0
    %p150 = por %p148, %p149
    %p151 = scmp.ne.s32.totalorder %s139, %s140
    %p152 = scmp.eq.s32.totalorder %s25, 1
    %p153 = por %p151, %p152
    %p155 = scmp.ne.s32.totalorder %s140, %s154
    %p156 = scmp.eq.s32.totalorder %s25, 0
    %p157 = por %p155, %p156
    %s159 = sadd.s32 %s158, 1
    %p162 = scmp.eq.s32.totalorder %s19, 1
    %p163 = scmp.ne.s32.totalorder %s158, %s160
    %p164 = scmp.eq.s32.totalorder %s19, 0
    %p165 = por %p163, %p164
    %p166 = scmp.ne.s32.totalorder %s158, %s160
    %p167 = scmp.eq.s32.totalorder %s24, 1
    %p168 = por %p166, %p167
    %p169 = scmp.ne.s32.totalorder %s160, %s161
    %p170 = scmp.eq.s32.totalorder %s24, 0
    %p171 = por %p169, %p170
    %p172 = scmp.ne.s32.totalorder %s160, %s161
    %p173 = scmp.eq.s32.totalorder %s25, 1
    %p174 = por %p172, %p173
    %p176 = scmp.ne.s32.totalorder %s161, %s175
    %p177 = scmp.eq.s32.totalorder %s25, 0
    %p178 = por %p176, %p177
    %s180 = sadd.s32 %s179, 1
    %p183 = scmp.eq.s32.totalorder %s19, 1
    %p184 = scmp.ne.s32.totalorder %s179, %s181
    %p185 = scmp.eq.s32.totalorder %s19, 0
    %p186 = por %p184, %p185
    %p187 = scmp.ne.s32.totalorder %s179, %s181
    %p188 = scmp.eq.s32.totalorder %s24, 1
    %p189 = por %p187, %p188
    %p190 = scmp.ne.s32.totalorder %s181, %s182
    %p191 = scmp.eq.s32.totalorder %s24, 0
    %p192 = por %p190, %p191
    %p193 = scmp.ne.s32.totalorder %s181, %s182
    %p194 = scmp.eq.s32.totalorder %s25, 1
    %p195 = por %p193, %p194
    %p197 = scmp.ne.s32.totalorder %s182, %s196
    %p198 = scmp.eq.s32.totalorder %s25, 0
    %p199 = por %p197, %p198
    %s201 = sadd.s32 %s200, 1
    %p204 = scmp.eq.s32.totalorder %s19, 1
    %p205 = scmp.ne.s32.totalorder %s200, %s202
    %p206 = scmp.eq.s32.totalorder %s19, 0
    %p207 = por %p205, %p206
    %p208 = scmp.ne.s32.totalorder %s200, %s202
    %p209 = scmp.eq.s32.totalorder %s24, 1
    %p210 = por %p208, %p209
    %p211 = scmp.ne.s32.totalorder %s202, %s203
    %p212 = scmp.eq.s32.totalorder %s24, 0
    %p213 = por %p211, %p212
    %p214 = scmp.ne.s32.totalorder %s202, %s203
    %p215 = scmp.eq.s32.totalorder %s25, 1
    %p216 = por %p214, %p215
    %p218 = scmp.ne.s32.totalorder %s203, %s217
    %p219 = scmp.eq.s32.totalorder %s25, 0
    %p220 = por %p218, %p219
    %s222 = sadd.s32 %s221, 1
    %p225 = scmp.eq.s32.totalorder %s19, 1
    %p226 = scmp.ne.s32.totalorder %s221, %s223
    %p227 = scmp.eq.s32.totalorder %s19, 0
    %p228 = por %p226, %p227
    %p229 = scmp.ne.s32.totalorder %s221, %s223
    %p230 = scmp.eq.s32.totalorder %s24, 1
    %p231 = por %p229, %p230
    %p232 = scmp.ne.s32.totalorder %s223, %s224
    %p233 = scmp.eq.s32.totalorder %s24, 0
    %p234 = por %p232, %p233
    %p235 = scmp.ne.s32.totalorder %s223, %s224
    %p236 = scmp.eq.s32.totalorder %s25, 1
    %p237 = por %p235, %p236
    %p239 = scmp.ne.s32.totalorder %s224, %s238
    %p240 = scmp.eq.s32.totalorder %s25, 0
    %p241 = por %p239, %p240
    %s243 = sadd.s32 %s242, 1
    %p246 = scmp.eq.s32.totalorder %s19, 1
    %p247 = scmp.ne.s32.totalorder %s242, %s244
    %p248 = scmp.eq.s32.totalorder %s19, 0
    %p249 = por %p247, %p248
    %p250 = scmp.ne.s32.totalorder %s242, %s244
    %p251 = scmp.eq.s32.totalorder %s24, 1
    %p252 = por %p250, %p251
    %p253 = scmp.ne.s32.totalorder %s244, %s245
    %p254 = scmp.eq.s32.totalorder %s24, 0
    %p255 = por %p253, %p254
    %p256 = scmp.ne.s32.totalorder %s244, %s245
    %p257 = scmp.eq.s32.totalorder %s25, 1
    %p258 = por %p256, %p257
    %p260 = scmp.ne.s32.totalorder %s245, %s259
    %p261 = scmp.eq.s32.totalorder %s25, 0
    %p262 = por %p260, %p261
    %s264 = sadd.s32 %s263, 1
    %p267 = scmp.eq.s32.totalorder %s19, 1
    %p268 = scmp.ne.s32.totalorder %s263, %s265
    %p269 = scmp.eq.s32.totalorder %s19, 0
    %p270 = por %p268, %p269
    %p271 = scmp.ne.s32.totalorder %s263, %s265
    %p272 = scmp.eq.s32.totalorder %s24, 1
    %p273 = por %p271, %p272
    %p274 = scmp.ne.s32.totalorder %s265, %s266
    %p275 = scmp.eq.s32.totalorder %s24, 0
    %p276 = por %p274, %p275
    %p277 = scmp.ne.s32.totalorder %s265, %s266
    %p278 = scmp.eq.s32.totalorder %s25, 1
    %p279 = por %p277, %p278
    %p281 = scmp.ne.s32.totalorder %s266, %s280
    %p282 = scmp.eq.s32.totalorder %s25, 0
    %p283 = por %p281, %p282
    %s285 = sadd.s32 %s284, 1
    %p288 = scmp.eq.s32.totalorder %s19, 1
    %p289 = scmp.ne.s32.totalorder %s284, %s286
    %p290 = scmp.eq.s32.totalorder %s19, 0
    %p291 = por %p289, %p290
    %p292 = scmp.ne.s32.totalorder %s284, %s286
    %p293 = scmp.eq.s32.totalorder %s24, 1
    %p294 = por %p292, %p293
    %p295 = scmp.ne.s32.totalorder %s286, %s287
    %p296 = scmp.eq.s32.totalorder %s24, 0
    %p297 = por %p295, %p296
    %p298 = scmp.ne.s32.totalorder %s286, %s287
    %p299 = scmp.eq.s32.totalorder %s25, 1
    %p300 = por %p298, %p299
    %p302 = scmp.ne.s32.totalorder %s287, %s301
    %p303 = scmp.eq.s32.totalorder %s25, 0
    %p304 = por %p302, %p303
    %s305 = ssub.s32 %s19, %s26
    %p306 = scmp.eq.s32.totalorder %s305, 0
    %s308 = sadd.s32 %s307, 1
    %s309 = scalar_select %p306, %s307, %s308
    %p312 = pneg %p306
    %p313 = scmp.eq.s32.totalorder %s19, 1
    %p314 = por %p312, %p313
    %p315 = scmp.ne.s32.totalorder %s307, %s310
    %p316 = scmp.eq.s32.totalorder %s19, 0
    %p317 = por %p315, %p316
    %p318 = scmp.ne.s32.totalorder %s307, %s310
    %p319 = scmp.eq.s32.totalorder %s24, 1
    %p320 = por %p318, %p319
    %p321 = scmp.ne.s32.totalorder %s310, %s311
    %p322 = scmp.eq.s32.totalorder %s24, 0
    %p323 = por %p321, %p322
    %p324 = scmp.ne.s32.totalorder %s310, %s311
    %p325 = scmp.eq.s32.totalorder %s25, 1
    %p326 = por %p324, %p325
    %p328 = scmp.ne.s32.totalorder %s311, %s327
    %p329 = scmp.eq.s32.totalorder %s25, 0
    %p330 = por %p328, %p329
    %p331 = scmp.le.s32.totalorder 1, %s19
    %p332 = scmp.lt.s32.totalorder %s19, 3
    %p333 = pnand %p331, %p332
    %p334 = pneg %p333
    // Predicated region
    $region9: #{csp_layer_pallas.1} parent=5 // pred_check
      _
    $region10: #{csp_layer_pallas.1} parent=5 // pred_check_branch
      %336 = sbr.rel (%p333) target = $region12
    $region11: #{csp_layer_pallas.1} parent=5 // pred_region
      %s337 = ssub.s32 %s19, 1
      // Predicated region
      $region13: #{csp_layer_pallas.1} parent=11 // pred_check
        %p338 = pneg %p66
      $region14: #{csp_layer_pallas.1} parent=11 // pred_check_branch
        %340 = sbr.rel (%p338) target = $region16
      $region15: #{csp_layer_pallas.1} parent=11 // pred_region
        _
      $region16: #{csp_layer_pallas.1} parent=11 // pred_fallthru
        _
      // Predicated region
      $region17: #{csp_layer_pallas.1} parent=11 // pred_check
        %p341 = pneg %p87
      $region18: #{csp_layer_pallas.1} parent=11 // pred_check_branch
        %343 = sbr.rel (%p341) target = $region20
      $region19: #{csp_layer_pallas.1} parent=11 // pred_region
        _
      $region20: #{csp_layer_pallas.1} parent=11 // pred_fallthru
        _
      // Predicated region
      $region21: #{csp_layer_pallas.1} parent=11 // pred_check
        %p344 = pneg %p108
      $region22: #{csp_layer_pallas.1} parent=11 // pred_check_branch
        %346 = sbr.rel (%p344) target = $region24
      $region23: #{csp_layer_pallas.1} parent=11 // pred_region
        _
      $region24: #{csp_layer_pallas.1} parent=11 // pred_fallthru
        _
      // Predicated region
      $region25: #{csp_layer_pallas.1} parent=11 // pred_check
        %p347 = pneg %p129
      $region26: #{csp_layer_pallas.1} parent=11 // pred_check_branch
        %349 = sbr.rel (%p347) target = $region28
      $region27: #{csp_layer_pallas.1} parent=11 // pred_region
        _
      $region28: #{csp_layer_pallas.1} parent=11 // pred_fallthru
        _
      // Predicated region
      $region29: #{csp_layer_pallas.1} parent=11 // pred_check
        %p350 = pneg %p150
      $region30: #{csp_layer_pallas.1} parent=11 // pred_check_branch
        %352 = sbr.rel (%p350) target = $region32
      $region31: #{csp_layer_pallas.1} parent=11 // pred_region
        _
      $region32: #{csp_layer_pallas.1} parent=11 // pred_fallthru
        _
      // Predicated region
      $region33: #{csp_layer_pallas.1} parent=11 // pred_check
        %p353 = pneg %p171
      $region34: #{csp_layer_pallas.1} parent=11 // pred_check_branch
        %355 = sbr.rel (%p353) target = $region36
      $region35: #{csp_layer_pallas.1} parent=11 // pred_region
        _
      $region36: #{csp_layer_pallas.1} parent=11 // pred_fallthru
        _
      // Predicated region
      $region37: #{csp_layer_pallas.1} parent=11 // pred_check
        %p356 = pneg %p192
      $region38: #{csp_layer_pallas.1} parent=11 // pred_check_branch
        %358 = sbr.rel (%p356) target = $region40
      $region39: #{csp_layer_pallas.1} parent=11 // pred_region
        _
      $region40: #{csp_layer_pallas.1} parent=11 // pred_fallthru
        _
      // Predicated region
      $region41: #{csp_layer_pallas.1} parent=11 // pred_check
        %p359 = pneg %p213
      $region42: #{csp_layer_pallas.1} parent=11 // pred_check_branch
        %361 = sbr.rel (%p359) target = $region44
      $region43: #{csp_layer_pallas.1} parent=11 // pred_region
        _
      $region44: #{csp_layer_pallas.1} parent=11 // pred_fallthru
        _
      // Predicated region
      $region45: #{csp_layer_pallas.1} parent=11 // pred_check
        %p362 = pneg %p234
      $region46: #{csp_layer_pallas.1} parent=11 // pred_check_branch
        %364 = sbr.rel (%p362) target = $region48
      $region47: #{csp_layer_pallas.1} parent=11 // pred_region
        _
      $region48: #{csp_layer_pallas.1} parent=11 // pred_fallthru
        _
      // Predicated region
      $region49: #{csp_layer_pallas.1} parent=11 // pred_check
        %p365 = pneg %p255
      $region50: #{csp_layer_pallas.1} parent=11 // pred_check_branch
        %367 = sbr.rel (%p365) target = $region52
      $region51: #{csp_layer_pallas.1} parent=11 // pred_region
        _
      $region52: #{csp_layer_pallas.1} parent=11 // pred_fallthru
        _
      // Predicated region
      $region53: #{csp_layer_pallas.1} parent=11 // pred_check
        %p368 = pneg %p276
      $region54: #{csp_layer_pallas.1} parent=11 // pred_check_branch
        %370 = sbr.rel (%p368) target = $region56
      $region55: #{csp_layer_pallas.1} parent=11 // pred_region
        _
      $region56: #{csp_layer_pallas.1} parent=11 // pred_fallthru
        _
      // Predicated region
      $region57: #{csp_layer_pallas.1} parent=11 // pred_check
        %p371 = pneg %p297
      $region58: #{csp_layer_pallas.1} parent=11 // pred_check_branch
        %373 = sbr.rel (%p371) target = $region60
      $region59: #{csp_layer_pallas.1} parent=11 // pred_region
        _
      $region60: #{csp_layer_pallas.1} parent=11 // pred_fallthru
        _
    $region12: #{csp_layer_pallas.1} parent=5 // pred_fallthru
      _
    %p374 = scmp.lt.s32.totalorder %s19, 2
    // Predicated region
    $region61: #{csp_layer_pallas.1} parent=5 // pred_check
      %p375 = pneg %p374
    $region62: #{csp_layer_pallas.1} parent=5 // pred_check_branch
      %377 = sbr.rel (%p375) target = $region64
    $region63: #{csp_layer_pallas.1} parent=5 // pred_region
      // Predicated region
      $region65: #{csp_layer_pallas.1} parent=63 // pred_check
        %p378 = pneg %p39
      $region66: #{csp_layer_pallas.1} parent=63 // pred_check_branch
        %380 = sbr.rel (%p378) target = $region68
      $region67: #{csp_layer_pallas.1} parent=63 // pred_region
        %p381 = scmp.lt.s32.totalorder %s19, 1
        %s382 = scalar_select %p381, %s19, 1
        %s383 = smul.addr %s382, 2
        %s384 = smul.addr %s383, 4
        %s385 = scalar_lea.vmem %s0, %s384
      $region68: #{csp_layer_pallas.1} parent=63 // pred_fallthru
        _
    $region64: #{csp_layer_pallas.1} parent=5 // pred_fallthru
      _
    %p386 = scmp.le.s32.totalorder 1, %s19
    %p387 = scmp.lt.s32.totalorder %s19, 3
    %p388 = pnand %p386, %p387
    %p389 = pneg %p388
    // Predicated region
    $region69: #{csp_layer_pallas.1} parent=5 // pred_check
      _
    $region70: #{csp_layer_pallas.1} parent=5 // pred_check_branch
      %391 = sbr.rel (%p388) target = $region72
    $region71: #{csp_layer_pallas.1} parent=5 // pred_region
      %s392 = ssub.s32 %s19, 1
      %p393 = scmp.lt.s32.totalorder %s24, 1
      %s394 = scalar_select %p393, %s24, 1
      %s395 = smul.addr %s394, 2
      %s396 = smul.addr %s395, 4
      %s397 = scalar_lea.vmem %s0, %s396
      %p398 = pneg %p45
      %p399 = pneg %p42
      %p400 = pneg %p66
      %p401 = pneg %p63
      %p402 = pneg %p87
      %p403 = pneg %p84
      %p404 = pneg %p108
      %p405 = pneg %p105
      %p406 = pneg %p129
      %p407 = pneg %p126
      %p408 = pneg %p150
      %p409 = pneg %p147
      %p410 = pneg %p171
      %p411 = pneg %p168
      %p412 = pneg %p192
      %p413 = pneg %p189
      %p414 = pneg %p213
      %p415 = pneg %p210
      %p416 = pneg %p234
      %p417 = pneg %p231
      %p418 = pneg %p255
      %p419 = pneg %p252
      %p420 = pneg %p276
      %p421 = pneg %p273
      %p422 = pneg %p297
      %p423 = pneg %p294
      %p424 = pneg %p323
      %p425 = pneg %p320
      %p426 = scmp.lt.s32.totalorder %s24, 1
      %s427 = scalar_select %p426, %s24, 1
      %s428 = smul.addr %s427, 2
      %s429 = smul.addr %s428, 8
      %s430 = scalar_lea.vmem %s13, %s429
      %p431 = scmp.lt.s32.totalorder %s24, 1
      %s432 = scalar_select %p431, %s24, 1
      %s433 = smul.addr %s432, 2
      %s434 = smul.addr %s433, 4
      %s435 = scalar_lea.vmem %s0, %s434
      %p436 = scmp.lt.s32.totalorder %s24, 1
      %s437 = scalar_select %p436, %s24, 1
      %s438 = smul.addr %s437, 2
      %s439 = smul.addr %s438, 8
      %s440 = scalar_lea.vmem %s13, %s439
      %v441 = vld [vmem:[%s435] sm:$0xff]
      %v442 = vld [vmem:[%s2] sm:$0xf]
      %v443 = vld [vmem:[%s3] sm:$0xf]
      %445 = vset.pattern.permute.xlu0 0
      %446 = vperm.xlu0 %445, %v443
      %v447 = vpop.permute.xlu0 %446
      %v450 = vcombine.high %v441, %v441
      %vm451 = vcmask 31744
      %v453 = vsel %vm451, %v442, 0
      %vm455 = vcmask 1043456
      %v456 = vsel %vm455, %v441, 0
      %v458 = vsel %vm455, %v450, 0
      %460 = vmatprep.subr.mxu0 %v458
      %461 = vmatpush1.msra.mxu0 %v456
      %462 = vmatprep.subr.mxu0 0.0
      %463 = vmatpush1.msra.mxu0 0.0
      %464 = vmatprep.subr.mxu0 0.0
      %465 = vmatpush1.msra.mxu0 0.0
      %466 = vmatprep.subr.mxu0 0.0
      %467 = vmatpush1.msra.mxu0 0.0
      %468 = vmatprep.subr.mxu0 0.0
      %469 = vmatpush1.msra.mxu0 0.0
      %470 = vmatprep.subr.mxu0 0.0
      %471 = vmatpush1.msra.mxu0 0.0
      %472 = vmatprep.subr.mxu0 0.0
      %473 = vmatpush1.msra.mxu0 0.0
      %474 = vmatprep.subr.mxu0 0.0
      %475 = vmatpush1.msra.mxu0 0.0
      %476 = vmatprep.subr.mxu0 0.0
      %477 = vmatpush1.msra.mxu0 0.0
      %478 = vmatprep.subr.mxu0 0.0
      %479 = vmatpush1.msra.mxu0 0.0
      %480 = vmatprep.subr.mxu0 0.0
      %481 = vmatpush1.msra.mxu0 0.0
      %482 = vmatprep.subr.mxu0 0.0
      %483 = vmatpush1.msra.mxu0 0.0
      %484 = vmatprep.subr.mxu0 0.0
      %485 = vmatpush1.msra.mxu0 0.0
      %486 = vmatprep.subr.mxu0 0.0
      %487 = vmatpush1.msra.mxu0 0.0
      %488 = vmatprep.subr.mxu0 0.0
      %489 = vmatpush1.msra.mxu0 0.0
      %490 = vmatprep.subr.mxu0 0.0
      %491 = vmatpush1.msra.mxu0 0.0
      %492 = vmatprep.subr.mxu0 0.0
      %493 = vmatpush1.msra.mxu0 0.0
      %494 = vmatprep.subr.mxu0 0.0
      %495 = vmatpush1.msra.mxu0 0.0
      %496 = vmatprep.subr.mxu0 0.0
      %497 = vmatpush1.msra.mxu0 0.0
      %498 = vmatprep.subr.mxu0 0.0
      %499 = vmatpush1.msra.mxu0 0.0
      %500 = vmatprep.subr.mxu0 0.0
      %501 = vmatpush1.msra.mxu0 0.0
      %502 = vmatprep.subr.mxu0 0.0
      %503 = vmatpush1.msra.mxu0 0.0
      %504 = vmatprep.subr.mxu0 0.0
      %505 = vmatpush1.msra.mxu0 0.0
      %506 = vmatprep.subr.mxu0 0.0
      %507 = vmatpush1.msra.mxu0 0.0
      %508 = vmatprep.subr.mxu0 0.0
      %509 = vmatpush1.msra.mxu0 0.0
      %510 = vmatprep.subr.mxu0 0.0
      %511 = vmatpush1.msra.mxu0 0.0
      %512 = vmatprep.subr.mxu0 0.0
      %513 = vmatpush1.msra.mxu0 0.0
      %514 = vmatprep.subr.mxu0 0.0
      %515 = vmatpush1.msra.mxu0 0.0
      %516 = vmatprep.subr.mxu0 0.0
      %517 = vmatpush1.msra.mxu0 0.0
      %518 = vmatprep.subr.mxu0 0.0
      %519 = vmatpush1.msra.mxu0 0.0
      %520 = vmatprep.subr.mxu0 0.0
      %521 = vmatpush1.msra.mxu0 0.0
      %522 = vmatprep.subr.mxu0 0.0
      %523 = vmatpush1.msra.mxu0 0.0
      %524 = vmatprep.mubr.f32.mxu0 0.0
      %525 = vmatmul.mubr.f32.gmra.mrb[0].mxu0 %v453
      %v526 = vpop.f32.mrb[0].mxu0
      %v527 = vadd.f32 %v447, %v526
      %v528 = vpop.f32.mrb[0].mxu0
      %v529 = vadd.f32 %v447, %v528
      %530 = vdwg.mxu0
      %v531 = vxor.u32 %v527, 2147483648
      %v532 = vxor.u32 %v529, 2147483648
      %v533 = vmul.f32 %v531, 1.442695
      %v534 = vpow.pop %v533
      %v535 = vmul.f32 %v532, 1.442695
      %v536 = vpow.pop %v535
      %v537 = vadd.f32 %v534, 1.0
      %v538 = vadd.f32 %v536, 1.0
      %v539 = vrcp.pop %v537
      %v540 = vmul.f32 1.0, %v539
      %v541 = vrcp.pop %v538
      %v542 = vmul.f32 1.0, %v541
      %v543 = vmul.f32 %v527, %v540
      %v544 = vmul.f32 %v529, %v542
      %v545 = vld [vmem:[%s4] sm:$0xf]
      %v546 = vld [vmem:[%s5] sm:$0xf]
      %548 = vset.pattern.permute.xlu0 0
      %549 = vperm.xlu0 %548, %v546
      %v550 = vpop.permute.xlu0 %549
      %v553 = vsel %vm451, %v545, 0
      %555 = vmatprep.subr.mxu0 %v458
      %556 = vmatpush1.msra.mxu0 %v456
      %557 = vmatprep.subr.mxu0 0.0
      %558 = vmatpush1.msra.mxu0 0.0
      %559 = vmatprep.subr.mxu0 0.0
      %560 = vmatpush1.msra.mxu0 0.0
      %561 = vmatprep.subr.mxu0 0.0
      %562 = vmatpush1.msra.mxu0 0.0
      %563 = vmatprep.subr.mxu0 0.0
      %564 = vmatpush1.msra.mxu0 0.0
      %565 = vmatprep.subr.mxu0 0.0
      %566 = vmatpush1.msra.mxu0 0.0
      %567 = vmatprep.subr.mxu0 0.0
      %568 = vmatpush1.msra.mxu0 0.0
      %569 = vmatprep.subr.mxu0 0.0
      %570 = vmatpush1.msra.mxu0 0.0
      %571 = vmatprep.subr.mxu0 0.0
      %572 = vmatpush1.msra.mxu0 0.0
      %573 = vmatprep.subr.mxu0 0.0
      %574 = vmatpush1.msra.mxu0 0.0
      %575 = vmatprep.subr.mxu0 0.0
      %576 = vmatpush1.msra.mxu0 0.0
      %577 = vmatprep.subr.mxu0 0.0
      %578 = vmatpush1.msra.mxu0 0.0
      %579 = vmatprep.subr.mxu0 0.0
      %580 = vmatpush1.msra.mxu0 0.0
      %581 = vmatprep.subr.mxu0 0.0
      %582 = vmatpush1.msra.mxu0 0.0
      %583 = vmatprep.subr.mxu0 0.0
      %584 = vmatpush1.msra.mxu0 0.0
      %585 = vmatprep.subr.mxu0 0.0
      %586 = vmatpush1.msra.mxu0 0.0
      %587 = vmatprep.subr.mxu0 0.0
      %588 = vmatpush1.msra.mxu0 0.0
      %589 = vmatprep.subr.mxu0 0.0
      %590 = vmatpush1.msra.mxu0 0.0
      %591 = vmatprep.subr.mxu0 0.0
      %592 = vmatpush1.msra.mxu0 0.0
      %593 = vmatprep.subr.mxu0 0.0
      %594 = vmatpush1.msra.mxu0 0.0
      %595 = vmatprep.subr.mxu0 0.0
      %596 = vmatpush1.msra.mxu0 0.0
      %597 = vmatprep.subr.mxu0 0.0
      %598 = vmatpush1.msra.mxu0 0.0
      %599 = vmatprep.subr.mxu0 0.0
      %600 = vmatpush1.msra.mxu0 0.0
      %601 = vmatprep.subr.mxu0 0.0
      %602 = vmatpush1.msra.mxu0 0.0
      %603 = vmatprep.subr.mxu0 0.0
      %604 = vmatpush1.msra.mxu0 0.0
      %605 = vmatprep.subr.mxu0 0.0
      %606 = vmatpush1.msra.mxu0 0.0
      %607 = vmatprep.subr.mxu0 0.0
      %608 = vmatpush1.msra.mxu0 0.0
      %609 = vmatprep.subr.mxu0 0.0
      %610 = vmatpush1.msra.mxu0 0.0
      %611 = vmatprep.subr.mxu0 0.0
      %612 = vmatpush1.msra.mxu0 0.0
      %613 = vmatprep.subr.mxu0 0.0
      %614 = vmatpush1.msra.mxu0 0.0
      %615 = vmatprep.subr.mxu0 0.0
      %616 = vmatpush1.msra.mxu0 0.0
      %617 = vmatprep.subr.mxu0 0.0
      %618 = vmatpush1.msra.mxu0 0.0
      %619 = vmatprep.mubr.f32.mxu0 0.0
      %620 = vmatmul.mubr.f32.gmra.mrb[0].mxu0 %v553
      %v621 = vpop.f32.mrb[0].mxu0
      %v622 = vadd.f32 %v550, %v621
      %v623 = vpop.f32.mrb[0].mxu0
      %v624 = vadd.f32 %v550, %v623
      %625 = vdwg.mxu0
      %v626 = vxor.u32 %v622, 2147483648
      %v627 = vxor.u32 %v624, 2147483648
      %v628 = vmul.f32 %v626, 1.442695
      %v629 = vpow.pop %v628
      %v630 = vmul.f32 %v627, 1.442695
      %v631 = vpow.pop %v630
      %v632 = vadd.f32 %v629, 1.0
      %v633 = vadd.f32 %v631, 1.0
      %v634 = vrcp.pop %v632
      %v635 = vmul.f32 1.0, %v634
      %v636 = vrcp.pop %v633
      %v637 = vmul.f32 1.0, %v636
      %v638 = vmul.f32 %v622, %v635
      %v639 = vmul.f32 %v624, %v637
      %v640 = vld [vmem:[%s6] sm:$0xf]
      %v641 = vld [vmem:[%s7] sm:$0xf]
      %643 = vset.pattern.permute.xlu0 0
      %644 = vperm.xlu0 %643, %v641
      %v645 = vpop.permute.xlu0 %644
      %v648 = vsel %vm451, %v640, 0
      %v651 = vsel %vm455, %v543, 0
      %v654 = vsel %vm455, %v544, 0
      %656 = vmatprep.subr.mxu0 %v654
      %657 = vmatpush1.msra.mxu0 %v651
      %658 = vmatprep.subr.mxu0 0.0
      %659 = vmatpush1.msra.mxu0 0.0
      %660 = vmatprep.subr.mxu0 0.0
      %661 = vmatpush1.msra.mxu0 0.0
      %662 = vmatprep.subr.mxu0 0.0
      %663 = vmatpush1.msra.mxu0 0.0
      %664 = vmatprep.subr.mxu0 0.0
      %665 = vmatpush1.msra.mxu0 0.0
      %666 = vmatprep.subr.mxu0 0.0
      %667 = vmatpush1.msra.mxu0 0.0
      %668 = vmatprep.subr.mxu0 0.0
      %669 = vmatpush1.msra.mxu0 0.0
      %670 = vmatprep.subr.mxu0 0.0
      %671 = vmatpush1.msra.mxu0 0.0
      %672 = vmatprep.subr.mxu0 0.0
      %673 = vmatpush1.msra.mxu0 0.0
      %674 = vmatprep.subr.mxu0 0.0
      %675 = vmatpush1.msra.mxu0 0.0
      %676 = vmatprep.subr.mxu0 0.0
      %677 = vmatpush1.msra.mxu0 0.0
      %678 = vmatprep.subr.mxu0 0.0
      %679 = vmatpush1.msra.mxu0 0.0
      %680 = vmatprep.subr.mxu0 0.0
      %681 = vmatpush1.msra.mxu0 0.0
      %682 = vmatprep.subr.mxu0 0.0
      %683 = vmatpush1.msra.mxu0 0.0
      %684 = vmatprep.subr.mxu0 0.0
      %685 = vmatpush1.msra.mxu0 0.0
      %686 = vmatprep.subr.mxu0 0.0
      %687 = vmatpush1.msra.mxu0 0.0
      %688 = vmatprep.subr.mxu0 0.0
      %689 = vmatpush1.msra.mxu0 0.0
      %690 = vmatprep.subr.mxu0 0.0
      %691 = vmatpush1.msra.mxu0 0.0
      %692 = vmatprep.subr.mxu0 0.0
      %693 = vmatpush1.msra.mxu0 0.0
      %694 = vmatprep.subr.mxu0 0.0
      %695 = vmatpush1.msra.mxu0 0.0
      %696 = vmatprep.subr.mxu0 0.0
      %697 = vmatpush1.msra.mxu0 0.0
      %698 = vmatprep.subr.mxu0 0.0
      %699 = vmatpush1.msra.mxu0 0.0
      %700 = vmatprep.subr.mxu0 0.0
      %701 = vmatpush1.msra.mxu0 0.0
      %702 = vmatprep.subr.mxu0 0.0
      %703 = vmatpush1.msra.mxu0 0.0
      %704 = vmatprep.subr.mxu0 0.0
      %705 = vmatpush1.msra.mxu0 0.0
      %706 = vmatprep.subr.mxu0 0.0
      %707 = vmatpush1.msra.mxu0 0.0
      %708 = vmatprep.subr.mxu0 0.0
      %709 = vmatpush1.msra.mxu0 0.0
      %710 = vmatprep.subr.mxu0 0.0
      %711 = vmatpush1.msra.mxu0 0.0
      %712 = vmatprep.subr.mxu0 0.0
      %713 = vmatpush1.msra.mxu0 0.0
      %714 = vmatprep.subr.mxu0 0.0
      %715 = vmatpush1.msra.mxu0 0.0
      %716 = vmatprep.subr.mxu0 0.0
      %717 = vmatpush1.msra.mxu0 0.0
      %718 = vmatprep.subr.mxu0 0.0
      %719 = vmatpush1.msra.mxu0 0.0
      %720 = vmatprep.mubr.f32.mxu0 0.0
      %721 = vmatmul.mubr.f32.gmra.mrb[0].mxu0 %v648
      %v722 = vpop.f32.mrb[0].mxu0
      %v723 = vadd.f32 %v645, %v722
      %v724 = vpop.f32.mrb[0].mxu0
      %v725 = vadd.f32 %v645, %v724
      %726 = vdwg.mxu0
      %v727 = vxor.u32 %v723, 2147483648
      %v728 = vxor.u32 %v725, 2147483648
      %v729 = vmul.f32 %v727, 1.442695
      %v730 = vpow.pop %v729
      %v731 = vmul.f32 %v728, 1.442695
      %v732 = vpow.pop %v731
      %v733 = vadd.f32 %v730, 1.0
      %v734 = vadd.f32 %v732, 1.0
      %v735 = vrcp.pop %v733
      %v736 = vmul.f32 1.0, %v735
      %v737 = vrcp.pop %v734
      %v738 = vmul.f32 1.0, %v737
      %v739 = vmul.f32 %v723, %v736
      %v740 = vmul.f32 %v725, %v738
      %v743 = vcombine.low %v739, %v740
      %745 = vst [vmem:[#allocation2] sm:$0xff] %v743
      %746 = vst [vmem:[#allocation3] sm:$0xff] 0.0
      %747 = vst [vmem:[#allocation3 + $0x8] sm:$0xff] 0.0
      %748 = vst [vmem:[#allocation3 + $0x10] sm:$0xff] 0.0
      %749 = vst [vmem:[#allocation3 + $0x18] sm:$0xff] 0.0
      %750 = vst [vmem:[#allocation3 + $0x20] sm:$0xff] 0.0
      %751 = vst [vmem:[#allocation3 + $0x28] sm:$0xff] 0.0
      %752 = vst [vmem:[#allocation3 + $0x30] sm:$0xff] 0.0
      %753 = vst [vmem:[#allocation3 + $0x38] sm:$0xff] 0.0
      %754 = vst [vmem:[#allocation3 + $0x40] sm:$0xf] 0.0
      %755 = vst [vmem:[#allocation3 + $0x48] sm:$0xf] 0.0
      %v756 = vld [vmem:[#allocation2] sm:$0xff]
      %v758 = vcombine.high %v756, %v756
      %759 = vrot.lane.b32.xlu0 %v756, 17
      %v760 = vpop.permute.xlu0 %759
      %761 = vrot.lane.b32.xlu0 %v758, 17
      %v762 = vpop.permute.xlu0 %761
      %vm763 = vcmask 138240
      %v764 = vsel %vm763, %v760, %v762
      %vm767 = vcmask 1043592
      %768 = vst.msk [vmem:[#allocation3] sm:$0xf] %vm767, %v760
      %769 = vst [vmem:[#allocation3 + $0x8] sm:$0xf] %v764
      %v770 = vld [vmem:[#allocation2] sm:$0xff]
      %v772 = vcombine.low %v770, %v770
      %773 = vrot.lane.b32.xlu0 %v772, 16
      %v774 = vpop.permute.xlu0 %773
      %775 = vrot.lane.b32.xlu0 %v770, 16
      %v776 = vpop.permute.xlu0 %775
      %vm777 = vcmask 130048
      %v778 = vsel %vm777, %v774, %v776
      %vm781 = vcmask 1047684
      %782 = vst.msk [vmem:[#allocation3] sm:$0xf0] %vm781, %v774
      %783 = vst [vmem:[#allocation3 + $0x8] sm:$0xf0] %v778
      %v784 = vld [vmem:[#allocation2] sm:$0xff]
      %v786 = vcombine.high %v784, %v784
      %787 = vrot.lane.b32.xlu0 %v784, 15
      %v788 = vpop.permute.xlu0 %787
      %789 = vrot.lane.b32.xlu0 %v786, 15
      %v790 = vpop.permute.xlu0 %789
      %vm791 = vcmask 121856
      %v792 = vsel %vm791, %v788, %v790
      %vm795 = vcmask 1043576
      %796 = vst.msk [vmem:[#allocation3 + $0x10] sm:$0xf] %vm795, %v788
      %797 = vst [vmem:[#allocation3 + $0x18] sm:$0xf] %v792
      %v798 = vld [vmem:[#allocation2] sm:$0xff]
      %v800 = vcombine.low %v798, %v798
      %801 = vrot.lane.b32.xlu0 %v800, 1
      %v802 = vpop.permute.xlu0 %801
      %803 = vrot.lane.b32.xlu0 %v798, 1
      %v804 = vpop.permute.xlu0 %803
      %vm805 = vcmask 7168
      %v806 = vsel %vm805, %v802, %v804
      %vm809 = vcmask 1047564
      %810 = vst.msk [vmem:[#allocation3 + $0x10] sm:$0xf0] %vm809, %v802
      %811 = vst [vmem:[#allocation3 + $0x18] sm:$0xf0] %v806
      %812 = vst [vmem:[#allocation3 + $0x20] sm:$0xf] %v739
      %813 = vst [vmem:[#allocation3 + $0x28] sm:$0xf] %v740
      %v814 = vld [vmem:[#allocation2] sm:$0xff]
      %v816 = vcombine.low %v814, %v814
      %817 = vrot.lane.b32.xlu0 %v816, 127
      %v818 = vpop.permute.xlu0 %817
      %819 = vrot.lane.b32.xlu0 %v814, 127
      %v820 = vpop.permute.xlu0 %819
      %vm821 = vcmask 1039360
      %v822 = vsel %vm821, %v818, %v820
      %825 = vst [vmem:[#allocation3 + $0x20] sm:$0xf0] %v822
      %vm826 = vcmask 1039364
      %827 = vst.msk [vmem:[#allocation3 + $0x28] sm:$0xf0] %vm826, %v820
      %v828 = vld [vmem:[#allocation2] sm:$0xff]
      %v830 = vcombine.high %v828, %v828
      %831 = vrot.lane.b32.xlu0 %v828, 113
      %v832 = vpop.permute.xlu0 %831
      %833 = vrot.lane.b32.xlu0 %v830, 113
      %v834 = vpop.permute.xlu0 %833
      %vm835 = vcmask 924672
      %v836 = vsel %vm835, %v832, %v834
      %839 = vst [vmem:[#allocation3 + $0x30] sm:$0xf] %v836
      %vm840 = vcmask 920576
      %841 = vst.msk [vmem:[#allocation3 + $0x38] sm:$0xf] %vm840, %v834
      %v842 = vld [vmem:[#allocation2] sm:$0xff]
      %v844 = vcombine.low %v842, %v842
      %845 = vrot.lane.b32.xlu0 %v844, 112
      %v846 = vpop.permute.xlu0 %845
      %847 = vrot.lane.b32.xlu0 %v842, 112
      %v848 = vpop.permute.xlu0 %847
      %vm849 = vcmask 916480
      %v850 = vsel %vm849, %v846, %v848
      %853 = vst [vmem:[#allocation3 + $0x30] sm:$0xf0] %v850
      %vm854 = vcmask 916484
      %855 = vst.msk [vmem:[#allocation3 + $0x38] sm:$0xf0] %vm854, %v848
      %v856 = vld [vmem:[#allocation2] sm:$0xff]
      %v858 = vcombine.high %v856, %v856
      %859 = vrot.lane.b32.xlu0 %v856, 111
      %v860 = vpop.permute.xlu0 %859
      %861 = vrot.lane.b32.xlu0 %v858, 111
      %v862 = vpop.permute.xlu0 %861
      %vm863 = vcmask 908288
      %v864 = vsel %vm863, %v860, %v862
      %867 = vst [vmem:[#allocation3 + $0x40] sm:$0xf] %v864
      %vm868 = vcmask 904192
      %869 = vst.msk [vmem:[#allocation3 + $0x48] sm:$0xf] %vm868, %v862
      %v870 = vld [vmem:[#allocation3] sm:$0xff]
      %v871 = vld [vmem:[#allocation3 + $0x8] sm:$0xff]
      %v872 = vld [vmem:[#allocation3 + $0x10] sm:$0xff]
      %v873 = vld [vmem:[#allocation3 + $0x18] sm:$0xff]
      %v874 = vld [vmem:[#allocation3 + $0x20] sm:$0xff]
      %v875 = vld [vmem:[#allocation3 + $0x28] sm:$0xff]
      %v876 = vld [vmem:[#allocation3 + $0x30] sm:$0xff]
      %v877 = vld [vmem:[#allocation3 + $0x38] sm:$0xff]
      %v878 = vld [vmem:[#allocation3 + $0x40] sm:$0xf]
      %v879 = vld [vmem:[#allocation3 + $0x48] sm:$0xf]
      %v880 = vld [vmem:[%s1] sm:$0xff]
      %v881 = vld [vmem:[%s1 + $0x8] sm:$0xff]
      %v882 = vld [vmem:[%s1 + $0x10] sm:$0xff]
      %v883 = vld [vmem:[%s1 + $0x18] sm:$0xff]
      %v884 = vld [vmem:[%s1 + $0x20] sm:$0xff]
      %v885 = vld [vmem:[%s1 + $0x28] sm:$0xff]
      %v886 = vld [vmem:[%s1 + $0x30] sm:$0xff]
      %v887 = vld [vmem:[%s1 + $0x38] sm:$0xff]
      %v888 = vld [vmem:[%s1 + $0x40] sm:$0xf]
      %v889 = vld [vmem:[%s1 + $0x48] sm:$0xf]
      %v890 = vmul.f32 %v870, %v880
      %v891 = vmul.f32 %v871, %v881
      %v892 = vmul.f32 %v872, %v882
      %v893 = vmul.f32 %v873, %v883
      %v894 = vmul.f32 %v874, %v884
      %v895 = vmul.f32 %v875, %v885
      %v896 = vmul.f32 %v876, %v886
      %v897 = vmul.f32 %v877, %v887
      %v898 = vmul.f32 %v878, %v888
      %v899 = vmul.f32 %v879, %v889
      %v900 = vld [vmem:[%s8] sm:$0xf]
      %v901 = vld [vmem:[%s9] sm:$0xf]
      %903 = vset.pattern.permute.xlu0 0
      %904 = vperm.xlu0 %903, %v901
      %v905 = vpop.permute.xlu0 %904
      %vm907 = vcmask 293888
      %v909 = vsel %vm907, %v900, 0
      %v912 = vsel %vm455, %v898, 0
      %v915 = vsel %vm455, %v899, 0
      %917 = vmatprep.subr.mxu0 %v891
      %918 = vmatpush1.msra.mxu0 %v890
      %919 = vmatprep.subr.mxu0 %v893
      %920 = vmatpush1.msra.mxu0 %v892
      %921 = vmatprep.subr.mxu0 %v895
      %922 = vmatpush1.msra.mxu0 %v894
      %923 = vmatprep.subr.mxu0 %v897
      %924 = vmatpush1.msra.mxu0 %v896
      %925 = vmatprep.subr.mxu0 %v915
      %926 = vmatpush1.msra.mxu0 %v912
      %927 = vmatprep.subr.mxu0 0.0
      %928 = vmatpush1.msra.mxu0 0.0
      %929 = vmatprep.subr.mxu0 0.0
      %930 = vmatpush1.msra.mxu0 0.0
      %931 = vmatprep.subr.mxu0 0.0
      %932 = vmatpush1.msra.mxu0 0.0
      %933 = vmatprep.subr.mxu0 0.0
      %934 = vmatpush1.msra.mxu0 0.0
      %935 = vmatprep.subr.mxu0 0.0
      %936 = vmatpush1.msra.mxu0 0.0
      %937 = vmatprep.subr.mxu0 0.0
      %938 = vmatpush1.msra.mxu0 0.0
      %939 = vmatprep.subr.mxu0 0.0
      %940 = vmatpush1.msra.mxu0 0.0
      %941 = vmatprep.subr.mxu0 0.0
      %942 = vmatpush1.msra.mxu0 0.0
      %943 = vmatprep.subr.mxu0 0.0
      %944 = vmatpush1.msra.mxu0 0.0
      %945 = vmatprep.subr.mxu0 0.0
      %946 = vmatpush1.msra.mxu0 0.0
      %947 = vmatprep.subr.mxu0 0.0
      %948 = vmatpush1.msra.mxu0 0.0
      %949 = vmatprep.subr.mxu0 0.0
      %950 = vmatpush1.msra.mxu0 0.0
      %951 = vmatprep.subr.mxu0 0.0
      %952 = vmatpush1.msra.mxu0 0.0
      %953 = vmatprep.subr.mxu0 0.0
      %954 = vmatpush1.msra.mxu0 0.0
      %955 = vmatprep.subr.mxu0 0.0
      %956 = vmatpush1.msra.mxu0 0.0
      %957 = vmatprep.subr.mxu0 0.0
      %958 = vmatpush1.msra.mxu0 0.0
      %959 = vmatprep.subr.mxu0 0.0
      %960 = vmatpush1.msra.mxu0 0.0
      %961 = vmatprep.subr.mxu0 0.0
      %962 = vmatpush1.msra.mxu0 0.0
      %963 = vmatprep.subr.mxu0 0.0
      %964 = vmatpush1.msra.mxu0 0.0
      %965 = vmatprep.subr.mxu0 0.0
      %966 = vmatpush1.msra.mxu0 0.0
      %967 = vmatprep.subr.mxu0 0.0
      %968 = vmatpush1.msra.mxu0 0.0
      %969 = vmatprep.subr.mxu0 0.0
      %970 = vmatpush1.msra.mxu0 0.0
      %971 = vmatprep.subr.mxu0 0.0
      %972 = vmatpush1.msra.mxu0 0.0
      %973 = vmatprep.subr.mxu0 0.0
      %974 = vmatpush1.msra.mxu0 0.0
      %975 = vmatprep.subr.mxu0 0.0
      %976 = vmatpush1.msra.mxu0 0.0
      %977 = vmatprep.subr.mxu0 0.0
      %978 = vmatpush1.msra.mxu0 0.0
      %979 = vmatprep.subr.mxu0 0.0
      %980 = vmatpush1.msra.mxu0 0.0
      %981 = vmatprep.mubr.f32.mxu0 0.0
      %982 = vmatmul.mubr.f32.gmra.mrb[0].mxu0 %v909
      %v983 = vpop.f32.mrb[0].mxu0
      %v984 = vadd.f32 %v905, %v983
      %v985 = vpop.f32.mrb[0].mxu0
      %v986 = vadd.f32 %v905, %v985
      %987 = vdwg.mxu0
      %v988 = vxor.u32 %v984, 2147483648
      %v989 = vxor.u32 %v986, 2147483648
      %v990 = vmul.f32 %v988, 1.442695
      %v991 = vpow.pop %v990
      %v992 = vmul.f32 %v989, 1.442695
      %v993 = vpow.pop %v992
      %v994 = vadd.f32 %v991, 1.0
      %v995 = vadd.f32 %v993, 1.0
      %v996 = vrcp.pop %v994
      %v997 = vmul.f32 1.0, %v996
      %v998 = vrcp.pop %v995
      %v999 = vmul.f32 1.0, %v998
      %v1000 = vmul.f32 %v984, %v997
      %v1001 = vmul.f32 %v986, %v999
      %v1002 = vadd.f32 %v1000, %v543
      %v1003 = vadd.f32 %v1001, %v544
      %v1004 = vld [vmem:[%s10] sm:$0xff]
      %v1005 = vld [vmem:[%s11] sm:$0xff]
      %v1007 = vsel %vm451, %v1005, 0
      %v1010 = vsel %vm455, %v638, 0
      %v1013 = vsel %vm455, %v639, 0
      %1015 = vmatprep.subr.mxu0 %v1013
      %1016 = vmatpush1.msra.mxu0 %v1010
      %1017 = vmatprep.subr.mxu0 0.0
      %1018 = vmatpush1.msra.mxu0 0.0
      %1019 = vmatprep.subr.mxu0 0.0
      %1020 = vmatpush1.msra.mxu0 0.0
      %1021 = vmatprep.subr.mxu0 0.0
      %1022 = vmatpush1.msra.mxu0 0.0
      %1023 = vmatprep.subr.mxu0 0.0
      %1024 = vmatpush1.msra.mxu0 0.0
      %1025 = vmatprep.subr.mxu0 0.0
      %1026 = vmatpush1.msra.mxu0 0.0
      %1027 = vmatprep.subr.mxu0 0.0
      %1028 = vmatpush1.msra.mxu0 0.0
      %1029 = vmatprep.subr.mxu0 0.0
      %1030 = vmatpush1.msra.mxu0 0.0
      %1031 = vmatprep.subr.mxu0 0.0
      %1032 = vmatpush1.msra.mxu0 0.0
      %1033 = vmatprep.subr.mxu0 0.0
      %1034 = vmatpush1.msra.mxu0 0.0
      %1035 = vmatprep.subr.mxu0 0.0
      %1036 = vmatpush1.msra.mxu0 0.0
      %1037 = vmatprep.subr.mxu0 0.0
      %1038 = vmatpush1.msra.mxu0 0.0
      %1039 = vmatprep.subr.mxu0 0.0
      %1040 = vmatpush1.msra.mxu0 0.0
      %1041 = vmatprep.subr.mxu0 0.0
      %1042 = vmatpush1.msra.mxu0 0.0
      %1043 = vmatprep.subr.mxu0 0.0
      %1044 = vmatpush1.msra.mxu0 0.0
      %1045 = vmatprep.subr.mxu0 0.0
      %1046 = vmatpush1.msra.mxu0 0.0
      %1047 = vmatprep.subr.mxu0 0.0
      %1048 = vmatpush1.msra.mxu0 0.0
      %1049 = vmatprep.subr.mxu0 0.0
      %1050 = vmatpush1.msra.mxu0 0.0
      %1051 = vmatprep.subr.mxu0 0.0
      %1052 = vmatpush1.msra.mxu0 0.0
      %1053 = vmatprep.subr.mxu0 0.0
      %1054 = vmatpush1.msra.mxu0 0.0
      %1055 = vmatprep.subr.mxu0 0.0
      %1056 = vmatpush1.msra.mxu0 0.0
      %1057 = vmatprep.subr.mxu0 0.0
      %1058 = vmatpush1.msra.mxu0 0.0
      %1059 = vmatprep.subr.mxu0 0.0
      %1060 = vmatpush1.msra.mxu0 0.0
      %1061 = vmatprep.subr.mxu0 0.0
      %1062 = vmatpush1.msra.mxu0 0.0
      %1063 = vmatprep.subr.mxu0 0.0
      %1064 = vmatpush1.msra.mxu0 0.0
      %1065 = vmatprep.subr.mxu0 0.0
      %1066 = vmatpush1.msra.mxu0 0.0
      %1067 = vmatprep.subr.mxu0 0.0
      %1068 = vmatpush1.msra.mxu0 0.0
      %1069 = vmatprep.subr.mxu0 0.0
      %1070 = vmatpush1.msra.mxu0 0.0
      %1071 = vmatprep.subr.mxu0 0.0
      %1072 = vmatpush1.msra.mxu0 0.0
      %1073 = vmatprep.subr.mxu0 0.0
      %1074 = vmatpush1.msra.mxu0 0.0
      %1075 = vmatprep.subr.mxu0 0.0
      %1076 = vmatpush1.msra.mxu0 0.0
      %1077 = vmatprep.subr.mxu0 0.0
      %1078 = vmatpush1.msra.mxu0 0.0
      %1079 = vmatprep.mubr.f32.mxu0 0.0
      %1080 = vmatmul.mubr.f32.gmra.mrb[0].mxu0 %v1007
      %v1081 = vpop.f32.mrb[0].mxu0
      %v1082 = vadd.f32 0.0, %v1081
      %v1083 = vpop.f32.mrb[0].mxu0
      %v1084 = vadd.f32 0.0, %v1083
      %1085 = vdwg.mxu0
      %v1087 = vsel %vm451, %v1004, 0
      %v1090 = vsel %vm455, %v1002, 0
      %v1093 = vsel %vm455, %v1003, 0
      %1095 = vmatprep.subr.mxu0 %v1093
      %1096 = vmatpush1.msra.mxu0 %v1090
      %1097 = vmatprep.subr.mxu0 0.0
      %1098 = vmatpush1.msra.mxu0 0.0
      %1099 = vmatprep.subr.mxu0 0.0
      %1100 = vmatpush1.msra.mxu0 0.0
      %1101 = vmatprep.subr.mxu0 0.0
      %1102 = vmatpush1.msra.mxu0 0.0
      %1103 = vmatprep.subr.mxu0 0.0
      %1104 = vmatpush1.msra.mxu0 0.0
      %1105 = vmatprep.subr.mxu0 0.0
      %1106 = vmatpush1.msra.mxu0 0.0
      %1107 = vmatprep.subr.mxu0 0.0
      %1108 = vmatpush1.msra.mxu0 0.0
      %1109 = vmatprep.subr.mxu0 0.0
      %1110 = vmatpush1.msra.mxu0 0.0
      %1111 = vmatprep.subr.mxu0 0.0
      %1112 = vmatpush1.msra.mxu0 0.0
      %1113 = vmatprep.subr.mxu0 0.0
      %1114 = vmatpush1.msra.mxu0 0.0
      %1115 = vmatprep.subr.mxu0 0.0
      %1116 = vmatpush1.msra.mxu0 0.0
      %1117 = vmatprep.subr.mxu0 0.0
      %1118 = vmatpush1.msra.mxu0 0.0
      %1119 = vmatprep.subr.mxu0 0.0
      %1120 = vmatpush1.msra.mxu0 0.0
      %1121 = vmatprep.subr.mxu0 0.0
      %1122 = vmatpush1.msra.mxu0 0.0
      %1123 = vmatprep.subr.mxu0 0.0
      %1124 = vmatpush1.msra.mxu0 0.0
      %1125 = vmatprep.subr.mxu0 0.0
      %1126 = vmatpush1.msra.mxu0 0.0
      %1127 = vmatprep.subr.mxu0 0.0
      %1128 = vmatpush1.msra.mxu0 0.0
      %1129 = vmatprep.subr.mxu0 0.0
      %1130 = vmatpush1.msra.mxu0 0.0
      %1131 = vmatprep.subr.mxu0 0.0
      %1132 = vmatpush1.msra.mxu0 0.0
      %1133 = vmatprep.subr.mxu0 0.0
      %1134 = vmatpush1.msra.mxu0 0.0
      %1135 = vmatprep.subr.mxu0 0.0
      %1136 = vmatpush1.msra.mxu0 0.0
      %1137 = vmatprep.subr.mxu0 0.0
      %1138 = vmatpush1.msra.mxu0 0.0
      %1139 = vmatprep.subr.mxu0 0.0
      %1140 = vmatpush1.msra.mxu0 0.0
      %1141 = vmatprep.subr.mxu0 0.0
      %1142 = vmatpush1.msra.mxu0 0.0
      %1143 = vmatprep.subr.mxu0 0.0
      %1144 = vmatpush1.msra.mxu0 0.0
      %1145 = vmatprep.subr.mxu0 0.0
      %1146 = vmatpush1.msra.mxu0 0.0
      %1147 = vmatprep.subr.mxu0 0.0
      %1148 = vmatpush1.msra.mxu0 0.0
      %1149 = vmatprep.subr.mxu0 0.0
      %1150 = vmatpush1.msra.mxu0 0.0
      %1151 = vmatprep.subr.mxu0 0.0
      %1152 = vmatpush1.msra.mxu0 0.0
      %1153 = vmatprep.subr.mxu0 0.0
      %1154 = vmatpush1.msra.mxu0 0.0
      %1155 = vmatprep.subr.mxu0 0.0
      %1156 = vmatpush1.msra.mxu0 0.0
      %1157 = vmatprep.subr.mxu0 0.0
      %1158 = vmatpush1.msra.mxu0 0.0
      %1159 = vmatprep.mubr.f32.mxu0 0.0
      %1160 = vmatmul.mubr.f32.gmra.mrb[0].mxu0 %v1087
      %v1161 = vpop.f32.mrb[0].mxu0
      %v1162 = vadd.f32 %v1082, %v1161
      %v1163 = vpop.f32.mrb[0].mxu0
      %v1164 = vadd.f32 %v1084, %v1163
      %1165 = vdwg.mxu0
      %v1166 = vld [vmem:[%s12] sm:$0xff]
      %1168 = vset.pattern.permute.xlu0 0
      %1169 = vperm.xlu0 %1168, %v1166
      %v1170 = vpop.permute.xlu0 %1169
      %v1172 = vadd.f32 %v1162, %v1170
      %v1173 = vadd.f32 %v1164, %v1170
      %v1174 = vxor.u32 %v1172, 2147483648
      %v1175 = vxor.u32 %v1173, 2147483648
      %v1176 = vmul.f32 %v1174, 1.442695
      %v1177 = vpow.pop %v1176
      %v1178 = vmul.f32 %v1175, 1.442695
      %v1179 = vpow.pop %v1178
      %v1180 = vadd.f32 %v1177, 1.0
      %v1181 = vadd.f32 %v1179, 1.0
      %v1182 = vrcp.pop %v1180
      %v1183 = vmul.f32 1.0, %v1182
      %v1184 = vrcp.pop %v1181
      %v1185 = vmul.f32 1.0, %v1184
      %v1186 = vmul.f32 %v1172, %v1183
      %v1187 = vmul.f32 %v1173, %v1185
      %1188 = vst [vmem:[%s440] sm:$0xff] %v1186
      %1189 = vst [vmem:[%s440 + $0x8] sm:$0xff] %v1187
      %p1190 = scmp.lt.s32.totalorder %s24, 1
      %s1191 = scalar_select %p1190, %s24, 1
      %s1192 = smul.addr %s1191, 2
      %s1193 = smul.addr %s1192, 8
      %s1194 = scalar_lea.vmem %s13, %s1193
      // Predicated region
      $region73: #{csp_layer_pallas.1} parent=71 // pred_check
        %p1195 = pneg %p320
      $region74: #{csp_layer_pallas.1} parent=71 // pred_check_branch
        %1197 = sbr.rel (%p1195) target = $region76
      $region75: #{csp_layer_pallas.1} parent=71 // pred_region
        _
      $region76: #{csp_layer_pallas.1} parent=71 // pred_fallthru
        _
    $region72: #{csp_layer_pallas.1} parent=5 // pred_fallthru
      _
    %p1198 = scmp.le.s32.totalorder 2, %s19
    // Predicated region
    $region77: #{csp_layer_pallas.1} parent=5 // pred_check
      %p1199 = pneg %p1198
    $region78: #{csp_layer_pallas.1} parent=5 // pred_check_branch
      %1201 = sbr.rel (%p1199) target = $region80
    $region79: #{csp_layer_pallas.1} parent=5 // pred_region
      %s1202 = ssub.s32 %s19, 2
      // Predicated region
      $region81: #{csp_layer_pallas.1} parent=79 // pred_check
        %p1203 = pneg %p326
      $region82: #{csp_layer_pallas.1} parent=79 // pred_check_branch
        %1205 = sbr.rel (%p1203) target = $region84
      $region83: #{csp_layer_pallas.1} parent=79 // pred_region
        %p1206 = scmp.lt.s32.totalorder %s25, 1
        %s1207 = scalar_select %p1206, %s25, 1
        %s1208 = smul.addr %s1207, 2
        %s1209 = smul.addr %s1208, 8
        %s1210 = scalar_lea.vmem %s13, %s1209
      $region84: #{csp_layer_pallas.1} parent=79 // pred_fallthru
        _
    $region80: #{csp_layer_pallas.1} parent=5 // pred_fallthru
      _
  $region6: #{csp_layer_pallas.1} parent=0 // loop_footer
    %s23 = sadd.s32 1, %s19
  $region7: #{csp_layer_pallas.1} parent=0 // loop_footer_branch
    %18 = sbr.rel target = $region3
  $region8: #{csp_layer_pallas.1} parent=0 // loop_exit
    _

</llo_original>
